<compile_context>
chip_gen: v6e
topology: v6e:2x2x1
jax: 0.10.0
libtpu: 0.0.40
codegen_flags: <defaults>
</compile_context>

<pallas_src>
import functools
import math

import numpy as np
import jax
import jax.numpy as jnp
from jax import lax
from jax.experimental import pallas as pl
from jax.experimental.pallas import tpu as pltpu

n_embd = 32
block_size = 8
n_head = 4
LN_EPS = 1e-5


def _erf(x):
    # Abramowitz & Stegun 7.1.26 rational approximation (max abs err ~1.5e-7).
    # Exact divide here (accuracy matters for exact-GELU); exp goes to the EUP.
    a1, a2, a3, a4, a5 = 0.254829592, -0.284496736, 1.421413741, -1.453152027, 1.061405429
    p = 0.3275911
    sign = jnp.where(x >= 0.0, 1.0, -1.0)
    ax = jnp.abs(x)
    t = 1.0 / (1.0 + p * ax)
    poly = ((((a5 * t + a4) * t + a3) * t + a2) * t + a1) * t
    return sign * (1.0 - poly * jnp.exp(-ax * ax))


def _gelu_exact(x):
    # PyTorch nn.GELU default = exact (erf-based) GELU.
    return 0.5 * x * (1.0 + _erf(x * (1.0 / math.sqrt(2.0))))


def _layernorm(x, gamma, beta):
    mu = jnp.mean(x, axis=-1, keepdims=True)
    var = jnp.mean((x - mu) ** 2, axis=-1, keepdims=True)
    return (x - mu) * lax.rsqrt(var + LN_EPS) * gamma + beta


def block_kernel(x_ref, ln1_g, ln1_b, w_qkv, w_proj, ln2_g, ln2_b,
                 w1, b1, w2, b2, out_ref, *, mm_dtype):
    bt, T, C = x_ref.shape
    D = C // n_head
    M = bt * T
    scale = 1.0 / math.sqrt(D)

    x = x_ref[...].astype(jnp.float32).reshape(M, C)

    # ---- LN1 + fused QKV projection: one (M,32)@(32,96) MXU dot ----
    h = _layernorm(x, ln1_g[...], ln1_b[...]).astype(mm_dtype)
    qkv = jnp.dot(h, w_qkv[...], preferred_element_type=jnp.float32)
    # Cast once to bf16 and keep bf16-resident for the whole head loop.
    qkv = qkv.astype(mm_dtype).reshape(bt, T, 3 * C)
    q = qkv[:, :, :C]
    k = qkv[:, :, C:2 * C]
    v = qkv[:, :, 2 * C:]

    # Causal additive mask, exactly as the torch module builds it:
    #   tril.masked_fill(tril == 0, -inf) -> finite on allowed, -inf elsewhere
    # (softmax is row-shift-invariant, so the allowed-position constant
    # cancels; every row has >=1 allowed key, so -inf never produces NaN).
    # Kept as a single (T,T) constant; broadcasts implicitly against (bt,T,T).
    row = lax.broadcasted_iota(jnp.int32, (T, T), 0)
    col = lax.broadcasted_iota(jnp.int32, (T, T), 1)
    addmask = jnp.where(col <= row, 0.0, -jnp.inf).astype(jnp.float32)

    # ---- multi-head attention, batched over the bt sequences of this tile ----
    # Static n_head loop; per-head contractions use the Mosaic-safe
    # single-batch-dim einsum pattern.  Head outputs stay bf16 in registers
    # and are lane-concatenated so c_proj is one (M,32)@(32,32) dot.
    head_outs = []
    for hd in range(n_head):
        lo, hi = hd * D, (hd + 1) * D
        qh = q[:, :, lo:hi]
        kh = k[:, :, lo:hi]
        vh = v[:, :, lo:hi]
        s = jnp.einsum("bqd,bkd->bqk", qh, kh,
                       preferred_element_type=jnp.float32) * scale + addmask
        s = s - jnp.max(s, axis=-1, keepdims=True)
        p = jnp.exp(s)
        p = p * pl.reciprocal(jnp.sum(p, axis=-1, keepdims=True), approx=True)
        oh = jnp.einsum("bqk,bkd->bqd", p.astype(mm_dtype), vh,
                        preferred_element_type=jnp.float32)
        head_outs.append(oh.astype(mm_dtype))
    att = jnp.concatenate(head_outs, axis=-1).reshape(M, C)      # (M, 32) bf16
    att_p = jnp.dot(att, w_proj[...], preferred_element_type=jnp.float32)

    x1 = x + att_p                                               # residual 1

    # ---- LN2 + MLP (Linear -> GELU -> Linear) + residual ----
    h2 = _layernorm(x1, ln2_g[...], ln2_b[...])
    f = jnp.dot(h2.astype(mm_dtype), w1[...],
                preferred_element_type=jnp.float32) + b1[...]
    f = _gelu_exact(f)
    f = jnp.dot(f.astype(mm_dtype), w2[...],
                preferred_element_type=jnp.float32) + b2[...]
    y = x1 + f                                                   # residual 2

    out_ref[...] = y.reshape(bt, T, C).astype(out_ref.dtype)


def _resident_spec(shape):
    # Full-extent block whose index never changes -> stays resident in VMEM
    # across all grid steps (weights / LN params / biases, ~30 KiB total).
    zeros = (0,) * len(shape)
    return pl.BlockSpec(shape, lambda b, _z=zeros: _z)


def _pick_batch_tile(B, T, target_rows=2048):
    # Largest divisor of B whose flattened tile (bt*T rows) is ~target_rows
    # (1024-4096 rows amortizes per-grid-step overhead; still only a few MiB
    # of VMEM).  Then, if the grid would collapse to a single step, halve the
    # tile so both v7x TensorCores get work on the "parallel" axis.
    bt = max(1, min(B, target_rows // T))
    while B % bt:
        bt -= 1
    if bt == B and B > 1:
        bt = B // 2
        while B % bt:
            bt -= 1
    return bt


def block_forward(x, params, batch_tile=None):
    B, T, C = x.shape
    assert C == n_embd and T <= block_size
    if batch_tile is None:
        batch_tile = _pick_batch_tile(B, T)
    assert B % batch_tile == 0, "batch_tile must divide B"
    grid = (B // batch_tile,)

    # bf16 MXU operands (f32 accumulate) on all generations; elementwise math
    # inside the kernel stays f32.
    mm_dtype = jnp.bfloat16

    w_qkv = params["w_attn"].astype(mm_dtype)     # fused (32, 96) c_attn
    w_proj = params["w_proj"].astype(mm_dtype)
    w1 = params["w1"].astype(mm_dtype)
    w2 = params["w2"].astype(mm_dtype)

    args = (
        x,
        params["ln1_g"].reshape(1, C), params["ln1_b"].reshape(1, C),
        w_qkv, w_proj,
        params["ln2_g"].reshape(1, C), params["ln2_b"].reshape(1, C),
        w1, params["b1"].reshape(1, 4 * C),
        w2, params["b2"].reshape(1, C),
    )

    x_spec = pl.BlockSpec((batch_tile, T, C), lambda b: (b, 0, 0))
    in_specs = [x_spec] + [_resident_spec(a.shape) for a in args[1:]]
    out_spec = pl.BlockSpec((batch_tile, T, C), lambda b: (b, 0, 0))

    kernel = functools.partial(block_kernel, mm_dtype=mm_dtype)
    return pl.pallas_call(
        kernel,
        out_shape=jax.ShapeDtypeStruct((B, T, C), jnp.float32),
        grid=grid,
        in_specs=in_specs,
        out_specs=out_spec,
        compiler_params=pltpu.CompilerParams(
            dimension_semantics=("parallel",)),
    )(*args)


def block_reference(x, p):
    """Pure-JAX reference mirroring the PyTorch forward (dropout = identity)."""
    B, T, C = x.shape
    D = C // n_head

    def ln(h, g, b):
        mu = h.mean(-1, keepdims=True)
        var = ((h - mu) ** 2).mean(-1, keepdims=True)
        return (h - mu) / jnp.sqrt(var + LN_EPS) * g + b

    h = ln(x, p["ln1_g"], p["ln1_b"])
    qkv = h @ p["w_attn"]
    q, k, v = jnp.split(qkv, 3, axis=-1)
    q = q.reshape(B, T, n_head, D).transpose(0, 2, 1, 3)
    k = k.reshape(B, T, n_head, D).transpose(0, 2, 1, 3)
    v = v.reshape(B, T, n_head, D).transpose(0, 2, 1, 3)
    tril = jnp.tril(jnp.ones((T, T), jnp.float32))
    addm = jnp.where(tril == 0, -jnp.inf, 1.0)
    s = q @ jnp.swapaxes(k, -1, -2) * (1.0 / math.sqrt(D)) + addm
    w = jax.nn.softmax(s, axis=-1)
    o = (w @ v).transpose(0, 2, 1, 3).reshape(B, T, C)
    x1 = x + o @ p["w_proj"]
    h2 = ln(x1, p["ln2_g"], p["ln2_b"])
    f = jax.nn.gelu(h2 @ p["w1"] + p["b1"], approximate=False)
    f = f @ p["w2"] + p["b2"]
    return x1 + f


def init_params(key):
    C = n_embd
    ks = jax.random.split(key, 8)
    scale = 0.02
    return {
        "ln1_g": jnp.ones((C,), jnp.float32),
        "ln1_b": jnp.zeros((C,), jnp.float32),
        "w_attn": scale * jax.random.normal(ks[0], (C, 3 * C), jnp.float32),
        "w_proj": scale * jax.random.normal(ks[1], (C, C), jnp.float32),
        "ln2_g": jnp.ones((C,), jnp.float32),
        "ln2_b": jnp.zeros((C,), jnp.float32),
        "w1": scale * jax.random.normal(ks[2], (C, 4 * C), jnp.float32),
        "b1": scale * jax.random.normal(ks[3], (4 * C,), jnp.float32),
        "w2": scale * jax.random.normal(ks[4], (4 * C, C), jnp.float32),
        "b2": scale * jax.random.normal(ks[5], (C,), jnp.float32),
    }


if __name__ == "__main__":
    key = jax.random.PRNGKey(0)
    k_x, k_p, k_x2 = jax.random.split(key, 3)
    B, T, C = 2, block_size, n_embd          # (2, 8, 32)
    x = jax.random.normal(k_x, (B, T, C), jnp.float32)
    params = init_params(k_p)

    # Small shape: tile picker gives bt=1, grid=(2,) ("parallel" axis, 2 steps).
    out = jax.block_until_ready(block_forward(x, params))
    ref = jax.block_until_ready(block_reference(x, params))
    assert out.shape == (B, T, C)
    np.testing.assert_allclose(np.asarray(out), np.asarray(ref), atol=3e-3, rtol=2e-2)

    # Default tile selection on a bigger batch: B=64 -> bt=32, grid=(2,).
    B2 = 64
    x2 = jax.random.normal(k_x2, (B2, T, C), jnp.float32)
    out2 = jax.block_until_ready(block_forward(x2, params))
    ref2 = jax.block_until_ready(block_reference(x2, params))
    np.testing.assert_allclose(np.asarray(out2), np.asarray(ref2), atol=3e-3, rtol=2e-2)

    # Explicit-tile path (grid=(4,), 2 sequences per tile).
    out3 = jax.block_until_ready(block_forward(x2, params, batch_tile=16))
    np.testing.assert_allclose(np.asarray(out3), np.asarray(ref2), atol=3e-3, rtol=2e-2)

    print("KERNEL_OK")
</pallas_src>

<mosaic_0001>
module attributes {stable_mosaic.version = 11 : i64} {
  func.func @block_kernel(%arg0: i32, %arg1: memref<1x8x32xf32, #tpu.memory_space<vmem>>, %arg2: memref<1x32xf32, #tpu.memory_space<vmem>>, %arg3: memref<1x32xf32, #tpu.memory_space<vmem>>, %arg4: memref<32x96xbf16, #tpu.memory_space<vmem>>, %arg5: memref<32x32xbf16, #tpu.memory_space<vmem>>, %arg6: memref<1x32xf32, #tpu.memory_space<vmem>>, %arg7: memref<1x32xf32, #tpu.memory_space<vmem>>, %arg8: memref<32x128xbf16, #tpu.memory_space<vmem>>, %arg9: memref<1x128xf32, #tpu.memory_space<vmem>>, %arg10: memref<128x32xbf16, #tpu.memory_space<vmem>>, %arg11: memref<1x32xf32, #tpu.memory_space<vmem>>, %arg12: memref<1x8x32xf32, #tpu.memory_space<vmem>>) attributes {dimension_semantics = [#tpu.dimension_semantics<parallel>], iteration_bounds = array<i64: 2>, scalar_prefetch = 0 : i64, scratch_operands = 0 : i64, tpu.core_type = #tpu.core_type<tc>, window_params = [{transform_indices = @transform_0, window_bounds = array<i64: 1, 8, 32>}, {pipeline_mode = #tpu.pipeline_mode<synchronous>, transform_indices = @transform_1, window_bounds = array<i64: 1, 32>}, {pipeline_mode = #tpu.pipeline_mode<synchronous>, transform_indices = @transform_2, window_bounds = array<i64: 1, 32>}, {pipeline_mode = #tpu.pipeline_mode<synchronous>, transform_indices = @transform_3, window_bounds = array<i64: 32, 96>}, {pipeline_mode = #tpu.pipeline_mode<synchronous>, transform_indices = @transform_4, window_bounds = array<i64: 32, 32>}, {pipeline_mode = #tpu.pipeline_mode<synchronous>, transform_indices = @transform_5, window_bounds = array<i64: 1, 32>}, {pipeline_mode = #tpu.pipeline_mode<synchronous>, transform_indices = @transform_6, window_bounds = array<i64: 1, 32>}, {pipeline_mode = #tpu.pipeline_mode<synchronous>, transform_indices = @transform_7, window_bounds = array<i64: 32, 128>}, {pipeline_mode = #tpu.pipeline_mode<synchronous>, transform_indices = @transform_8, window_bounds = array<i64: 1, 128>}, {pipeline_mode = #tpu.pipeline_mode<synchronous>, transform_indices = @transform_9, window_bounds = array<i64: 128, 32>}, {pipeline_mode = #tpu.pipeline_mode<synchronous>, transform_indices = @transform_10, window_bounds = array<i64: 1, 32>}, {transform_indices = @transform_11, window_bounds = array<i64: 1, 8, 32>}]} {
    %c0 = arith.constant 0 : index
    %c0_0 = arith.constant 0 : index
    %c0_1 = arith.constant 0 : index
    %0 = vector.load %arg1[%c0, %c0_0, %c0_1] : memref<1x8x32xf32, #tpu.memory_space<vmem>>, vector<1x8x32xf32>
    %1 = vector.shape_cast %0 : vector<1x8x32xf32> to vector<8x32xf32>
    %c0_2 = arith.constant 0 : index
    %c0_3 = arith.constant 0 : index
    %2 = vector.load %arg2[%c0_2, %c0_3] : memref<1x32xf32, #tpu.memory_space<vmem>>, vector<1x32xf32>
    %c0_4 = arith.constant 0 : index
    %c0_5 = arith.constant 0 : index
    %3 = vector.load %arg3[%c0_4, %c0_5] : memref<1x32xf32, #tpu.memory_space<vmem>>, vector<1x32xf32>
    %cst = arith.constant dense<0.000000e+00> : vector<8xf32>
    %4 = vector.multi_reduction <add>, %1, %cst [1] : vector<8x32xf32> to vector<8xf32>
    %5 = vector.shape_cast %4 : vector<8xf32> to vector<8x1xf32>
    %cst_6 = arith.constant 3.200000e+01 : f32
    %6 = vector.broadcast %cst_6 : f32 to vector<8x1xf32>
    %7 = arith.divf %5, %6 : vector<8x1xf32>
    %8 = vector.broadcast %7 : vector<8x1xf32> to vector<8x32xf32>
    %9 = arith.subf %1, %8 : vector<8x32xf32>
    %10 = arith.mulf %9, %9 : vector<8x32xf32>
    %cst_7 = arith.constant dense<0.000000e+00> : vector<8xf32>
    %11 = vector.multi_reduction <add>, %10, %cst_7 [1] : vector<8x32xf32> to vector<8xf32>
    %12 = vector.shape_cast %11 : vector<8xf32> to vector<8x1xf32>
    %cst_8 = arith.constant 3.200000e+01 : f32
    %13 = vector.broadcast %cst_8 : f32 to vector<8x1xf32>
    %14 = arith.divf %12, %13 : vector<8x1xf32>
    %15 = vector.broadcast %7 : vector<8x1xf32> to vector<8x32xf32>
    %16 = arith.subf %1, %15 : vector<8x32xf32>
    %cst_9 = arith.constant 9.99999974E-6 : f32
    %17 = vector.broadcast %cst_9 : f32 to vector<8x1xf32>
    %18 = arith.addf %14, %17 : vector<8x1xf32>
    %19 = math.rsqrt %18 : vector<8x1xf32>
    %20 = vector.broadcast %19 : vector<8x1xf32> to vector<8x32xf32>
    %21 = arith.mulf %16, %20 : vector<8x32xf32>
    %22 = vector.broadcast %2 : vector<1x32xf32> to vector<8x32xf32>
    %23 = arith.mulf %21, %22 : vector<8x32xf32>
    %24 = vector.broadcast %3 : vector<1x32xf32> to vector<8x32xf32>
    %25 = arith.addf %23, %24 : vector<8x32xf32>
    %26 = arith.truncf %25 : vector<8x32xf32> to vector<8x32xbf16>
    %c0_10 = arith.constant 0 : index
    %c0_11 = arith.constant 0 : index
    %27 = vector.load %arg4[%c0_10, %c0_11] : memref<32x96xbf16, #tpu.memory_space<vmem>>, vector<32x96xbf16>
    %cst_12 = arith.constant dense<0.000000e+00> : vector<8x96xf32>
    %28 = tpu.matmul %26, %27, %cst_12 {dimension_numbers = #tpu.dot_dimension_numbers<[1], [0], [0], [1], [0, 0, 1, 1], [], []>} : vector<8x32xbf16>, vector<32x96xbf16>, vector<8x96xf32> -> vector<8x96xf32>
    %29 = arith.truncf %28 : vector<8x96xf32> to vector<8x96xbf16>
    %30 = vector.shape_cast %29 : vector<8x96xbf16> to vector<1x8x96xbf16>
    %31 = vector.extract_strided_slice %30 {offsets = [0, 0, 0], sizes = [1, 8, 32], strides = [1, 1, 1]} : vector<1x8x96xbf16> to vector<1x8x32xbf16>
    %32 = vector.extract_strided_slice %30 {offsets = [0, 0, 32], sizes = [1, 8, 32], strides = [1, 1, 1]} : vector<1x8x96xbf16> to vector<1x8x32xbf16>
    %33 = vector.extract_strided_slice %30 {offsets = [0, 0, 64], sizes = [1, 8, 32], strides = [1, 1, 1]} : vector<1x8x96xbf16> to vector<1x8x32xbf16>
    %34 = tpu.iota {dimensions = array<i32: 0>} : vector<8x8xi32>
    %35 = tpu.iota {dimensions = array<i32: 1>} : vector<8x8xi32>
    %36 = arith.cmpi sle, %35, %34 : vector<8x8xi32>
    %cst_13 = arith.constant 0.000000e+00 : f32
    %cst_14 = arith.constant 0xFF800000 : f32
    %37 = vector.broadcast %cst_13 : f32 to vector<8x8xf32>
    %38 = vector.broadcast %cst_14 : f32 to vector<8x8xf32>
    %39 = arith.select %36, %37, %38 : vector<8x8xi1>, vector<8x8xf32>
    %40 = vector.extract_strided_slice %31 {offsets = [0, 0, 0], sizes = [1, 8, 8], strides = [1, 1, 1]} : vector<1x8x32xbf16> to vector<1x8x8xbf16>
    %41 = vector.extract_strided_slice %32 {offsets = [0, 0, 0], sizes = [1, 8, 8], strides = [1, 1, 1]} : vector<1x8x32xbf16> to vector<1x8x8xbf16>
    %42 = vector.extract_strided_slice %33 {offsets = [0, 0, 0], sizes = [1, 8, 8], strides = [1, 1, 1]} : vector<1x8x32xbf16> to vector<1x8x8xbf16>
    "tpu.trace_start"() <{level = 10 : i32, message = "bqd,bkd->bqk"}> : () -> ()
    %cst_15 = arith.constant dense<0.000000e+00> : vector<1x8x8xf32>
    %43 = tpu.matmul %40, %41, %cst_15 {dimension_numbers = #tpu.dot_dimension_numbers<[2], [2], [1], [1], [0, 0, 0, 1, 1, 1], [0], [0]>} : vector<1x8x8xbf16>, vector<1x8x8xbf16>, vector<1x8x8xf32> -> vector<1x8x8xf32>
    "tpu.trace_stop"() : () -> ()
    %cst_16 = arith.constant 0.353553385 : f32
    %44 = vector.broadcast %cst_16 : f32 to vector<1x8x8xf32>
    %45 = arith.mulf %43, %44 : vector<1x8x8xf32>
    %46 = vector.shape_cast %39 : vector<8x8xf32> to vector<1x8x8xf32>
    %47 = arith.addf %45, %46 : vector<1x8x8xf32>
    %cst_17 = arith.constant dense<0xFF800000> : vector<1x8xf32>
    %48 = vector.multi_reduction <maximumf>, %47, %cst_17 [2] : vector<1x8x8xf32> to vector<1x8xf32>
    %49 = vector.shape_cast %48 : vector<1x8xf32> to vector<1x8x1xf32>
    %50 = vector.broadcast %49 : vector<1x8x1xf32> to vector<1x8x8xf32>
    %51 = arith.subf %47, %50 : vector<1x8x8xf32>
    %52 = math.exp %51 : vector<1x8x8xf32>
    %cst_18 = arith.constant dense<0.000000e+00> : vector<1x8xf32>
    %53 = vector.multi_reduction <add>, %52, %cst_18 [2] : vector<1x8x8xf32> to vector<1x8xf32>
    %54 = vector.shape_cast %53 : vector<1x8xf32> to vector<1x8x1xf32>
    %55 = tpu.reciprocal %54 {approx = true} : vector<1x8x1xf32> -> vector<1x8x1xf32>
    %56 = vector.broadcast %55 : vector<1x8x1xf32> to vector<1x8x8xf32>
    %57 = arith.mulf %52, %56 : vector<1x8x8xf32>
    %58 = arith.truncf %57 : vector<1x8x8xf32> to vector<1x8x8xbf16>
    "tpu.trace_start"() <{level = 10 : i32, message = "bqk,bkd->bqd"}> : () -> ()
    %cst_19 = arith.constant dense<0.000000e+00> : vector<1x8x8xf32>
    %59 = tpu.matmul %58, %42, %cst_19 {dimension_numbers = #tpu.dot_dimension_numbers<[2], [1], [1], [2], [0, 0, 0, 1, 1, 2], [0], [0]>} : vector<1x8x8xbf16>, vector<1x8x8xbf16>, vector<1x8x8xf32> -> vector<1x8x8xf32>
    "tpu.trace_stop"() : () -> ()
    %60 = arith.truncf %59 : vector<1x8x8xf32> to vector<1x8x8xbf16>
    %61 = vector.extract_strided_slice %31 {offsets = [0, 0, 8], sizes = [1, 8, 8], strides = [1, 1, 1]} : vector<1x8x32xbf16> to vector<1x8x8xbf16>
    %62 = vector.extract_strided_slice %32 {offsets = [0, 0, 8], sizes = [1, 8, 8], strides = [1, 1, 1]} : vector<1x8x32xbf16> to vector<1x8x8xbf16>
    %63 = vector.extract_strided_slice %33 {offsets = [0, 0, 8], sizes = [1, 8, 8], strides = [1, 1, 1]} : vector<1x8x32xbf16> to vector<1x8x8xbf16>
    "tpu.trace_start"() <{level = 10 : i32, message = "bqd,bkd->bqk"}> : () -> ()
    %cst_20 = arith.constant dense<0.000000e+00> : vector<1x8x8xf32>
    %64 = tpu.matmul %61, %62, %cst_20 {dimension_numbers = #tpu.dot_dimension_numbers<[2], [2], [1], [1], [0, 0, 0, 1, 1, 1], [0], [0]>} : vector<1x8x8xbf16>, vector<1x8x8xbf16>, vector<1x8x8xf32> -> vector<1x8x8xf32>
    "tpu.trace_stop"() : () -> ()
    %cst_21 = arith.constant 0.353553385 : f32
    %65 = vector.broadcast %cst_21 : f32 to vector<1x8x8xf32>
    %66 = arith.mulf %64, %65 : vector<1x8x8xf32>
    %67 = vector.shape_cast %39 : vector<8x8xf32> to vector<1x8x8xf32>
    %68 = arith.addf %66, %67 : vector<1x8x8xf32>
    %cst_22 = arith.constant dense<0xFF800000> : vector<1x8xf32>
    %69 = vector.multi_reduction <maximumf>, %68, %cst_22 [2] : vector<1x8x8xf32> to vector<1x8xf32>
    %70 = vector.shape_cast %69 : vector<1x8xf32> to vector<1x8x1xf32>
    %71 = vector.broadcast %70 : vector<1x8x1xf32> to vector<1x8x8xf32>
    %72 = arith.subf %68, %71 : vector<1x8x8xf32>
    %73 = math.exp %72 : vector<1x8x8xf32>
    %cst_23 = arith.constant dense<0.000000e+00> : vector<1x8xf32>
    %74 = vector.multi_reduction <add>, %73, %cst_23 [2] : vector<1x8x8xf32> to vector<1x8xf32>
    %75 = vector.shape_cast %74 : vector<1x8xf32> to vector<1x8x1xf32>
    %76 = tpu.reciprocal %75 {approx = true} : vector<1x8x1xf32> -> vector<1x8x1xf32>
    %77 = vector.broadcast %76 : vector<1x8x1xf32> to vector<1x8x8xf32>
    %78 = arith.mulf %73, %77 : vector<1x8x8xf32>
    %79 = arith.truncf %78 : vector<1x8x8xf32> to vector<1x8x8xbf16>
    "tpu.trace_start"() <{level = 10 : i32, message = "bqk,bkd->bqd"}> : () -> ()
    %cst_24 = arith.constant dense<0.000000e+00> : vector<1x8x8xf32>
    %80 = tpu.matmul %79, %63, %cst_24 {dimension_numbers = #tpu.dot_dimension_numbers<[2], [1], [1], [2], [0, 0, 0, 1, 1, 2], [0], [0]>} : vector<1x8x8xbf16>, vector<1x8x8xbf16>, vector<1x8x8xf32> -> vector<1x8x8xf32>
    "tpu.trace_stop"() : () -> ()
    %81 = arith.truncf %80 : vector<1x8x8xf32> to vector<1x8x8xbf16>
    %82 = vector.extract_strided_slice %31 {offsets = [0, 0, 16], sizes = [1, 8, 8], strides = [1, 1, 1]} : vector<1x8x32xbf16> to vector<1x8x8xbf16>
    %83 = vector.extract_strided_slice %32 {offsets = [0, 0, 16], sizes = [1, 8, 8], strides = [1, 1, 1]} : vector<1x8x32xbf16> to vector<1x8x8xbf16>
    %84 = vector.extract_strided_slice %33 {offsets = [0, 0, 16], sizes = [1, 8, 8], strides = [1, 1, 1]} : vector<1x8x32xbf16> to vector<1x8x8xbf16>
    "tpu.trace_start"() <{level = 10 : i32, message = "bqd,bkd->bqk"}> : () -> ()
    %cst_25 = arith.constant dense<0.000000e+00> : vector<1x8x8xf32>
    %85 = tpu.matmul %82, %83, %cst_25 {dimension_numbers = #tpu.dot_dimension_numbers<[2], [2], [1], [1], [0, 0, 0, 1, 1, 1], [0], [0]>} : vector<1x8x8xbf16>, vector<1x8x8xbf16>, vector<1x8x8xf32> -> vector<1x8x8xf32>
    "tpu.trace_stop"() : () -> ()
    %cst_26 = arith.constant 0.353553385 : f32
    %86 = vector.broadcast %cst_26 : f32 to vector<1x8x8xf32>
    %87 = arith.mulf %85, %86 : vector<1x8x8xf32>
    %88 = vector.shape_cast %39 : vector<8x8xf32> to vector<1x8x8xf32>
    %89 = arith.addf %87, %88 : vector<1x8x8xf32>
    %cst_27 = arith.constant dense<0xFF800000> : vector<1x8xf32>
    %90 = vector.multi_reduction <maximumf>, %89, %cst_27 [2] : vector<1x8x8xf32> to vector<1x8xf32>
    %91 = vector.shape_cast %90 : vector<1x8xf32> to vector<1x8x1xf32>
    %92 = vector.broadcast %91 : vector<1x8x1xf32> to vector<1x8x8xf32>
    %93 = arith.subf %89, %92 : vector<1x8x8xf32>
    %94 = math.exp %93 : vector<1x8x8xf32>
    %cst_28 = arith.constant dense<0.000000e+00> : vector<1x8xf32>
    %95 = vector.multi_reduction <add>, %94, %cst_28 [2] : vector<1x8x8xf32> to vector<1x8xf32>
    %96 = vector.shape_cast %95 : vector<1x8xf32> to vector<1x8x1xf32>
    %97 = tpu.reciprocal %96 {approx = true} : vector<1x8x1xf32> -> vector<1x8x1xf32>
    %98 = vector.broadcast %97 : vector<1x8x1xf32> to vector<1x8x8xf32>
    %99 = arith.mulf %94, %98 : vector<1x8x8xf32>
    %100 = arith.truncf %99 : vector<1x8x8xf32> to vector<1x8x8xbf16>
    "tpu.trace_start"() <{level = 10 : i32, message = "bqk,bkd->bqd"}> : () -> ()
    %cst_29 = arith.constant dense<0.000000e+00> : vector<1x8x8xf32>
    %101 = tpu.matmul %100, %84, %cst_29 {dimension_numbers = #tpu.dot_dimension_numbers<[2], [1], [1], [2], [0, 0, 0, 1, 1, 2], [0], [0]>} : vector<1x8x8xbf16>, vector<1x8x8xbf16>, vector<1x8x8xf32> -> vector<1x8x8xf32>
    "tpu.trace_stop"() : () -> ()
    %102 = arith.truncf %101 : vector<1x8x8xf32> to vector<1x8x8xbf16>
    %103 = vector.extract_strided_slice %31 {offsets = [0, 0, 24], sizes = [1, 8, 8], strides = [1, 1, 1]} : vector<1x8x32xbf16> to vector<1x8x8xbf16>
    %104 = vector.extract_strided_slice %32 {offsets = [0, 0, 24], sizes = [1, 8, 8], strides = [1, 1, 1]} : vector<1x8x32xbf16> to vector<1x8x8xbf16>
    %105 = vector.extract_strided_slice %33 {offsets = [0, 0, 24], sizes = [1, 8, 8], strides = [1, 1, 1]} : vector<1x8x32xbf16> to vector<1x8x8xbf16>
    "tpu.trace_start"() <{level = 10 : i32, message = "bqd,bkd->bqk"}> : () -> ()
    %cst_30 = arith.constant dense<0.000000e+00> : vector<1x8x8xf32>
    %106 = tpu.matmul %103, %104, %cst_30 {dimension_numbers = #tpu.dot_dimension_numbers<[2], [2], [1], [1], [0, 0, 0, 1, 1, 1], [0], [0]>} : vector<1x8x8xbf16>, vector<1x8x8xbf16>, vector<1x8x8xf32> -> vector<1x8x8xf32>
    "tpu.trace_stop"() : () -> ()
    %cst_31 = arith.constant 0.353553385 : f32
    %107 = vector.broadcast %cst_31 : f32 to vector<1x8x8xf32>
    %108 = arith.mulf %106, %107 : vector<1x8x8xf32>
    %109 = vector.shape_cast %39 : vector<8x8xf32> to vector<1x8x8xf32>
    %110 = arith.addf %108, %109 : vector<1x8x8xf32>
    %cst_32 = arith.constant dense<0xFF800000> : vector<1x8xf32>
    %111 = vector.multi_reduction <maximumf>, %110, %cst_32 [2] : vector<1x8x8xf32> to vector<1x8xf32>
    %112 = vector.shape_cast %111 : vector<1x8xf32> to vector<1x8x1xf32>
    %113 = vector.broadcast %112 : vector<1x8x1xf32> to vector<1x8x8xf32>
    %114 = arith.subf %110, %113 : vector<1x8x8xf32>
    %115 = math.exp %114 : vector<1x8x8xf32>
    %cst_33 = arith.constant dense<0.000000e+00> : vector<1x8xf32>
    %116 = vector.multi_reduction <add>, %115, %cst_33 [2] : vector<1x8x8xf32> to vector<1x8xf32>
    %117 = vector.shape_cast %116 : vector<1x8xf32> to vector<1x8x1xf32>
    %118 = tpu.reciprocal %117 {approx = true} : vector<1x8x1xf32> -> vector<1x8x1xf32>
    %119 = vector.broadcast %118 : vector<1x8x1xf32> to vector<1x8x8xf32>
    %120 = arith.mulf %115, %119 : vector<1x8x8xf32>
    %121 = arith.truncf %120 : vector<1x8x8xf32> to vector<1x8x8xbf16>
    "tpu.trace_start"() <{level = 10 : i32, message = "bqk,bkd->bqd"}> : () -> ()
    %cst_34 = arith.constant dense<0.000000e+00> : vector<1x8x8xf32>
    %122 = tpu.matmul %121, %105, %cst_34 {dimension_numbers = #tpu.dot_dimension_numbers<[2], [1], [1], [2], [0, 0, 0, 1, 1, 2], [0], [0]>} : vector<1x8x8xbf16>, vector<1x8x8xbf16>, vector<1x8x8xf32> -> vector<1x8x8xf32>
    "tpu.trace_stop"() : () -> ()
    %123 = arith.truncf %122 : vector<1x8x8xf32> to vector<1x8x8xbf16>
    %124 = tpu.concatenate %60, %81, %102, %123 in 2 : vector<1x8x8xbf16>, vector<1x8x8xbf16>, vector<1x8x8xbf16>, vector<1x8x8xbf16> -> vector<1x8x32xbf16>
    %125 = vector.shape_cast %124 : vector<1x8x32xbf16> to vector<8x32xbf16>
    %c0_35 = arith.constant 0 : index
    %c0_36 = arith.constant 0 : index
    %126 = vector.load %arg5[%c0_35, %c0_36] : memref<32x32xbf16, #tpu.memory_space<vmem>>, vector<32x32xbf16>
    %cst_37 = arith.constant dense<0.000000e+00> : vector<8x32xf32>
    %127 = tpu.matmul %125, %126, %cst_37 {dimension_numbers = #tpu.dot_dimension_numbers<[1], [0], [0], [1], [0, 0, 1, 1], [], []>} : vector<8x32xbf16>, vector<32x32xbf16>, vector<8x32xf32> -> vector<8x32xf32>
    %128 = arith.addf %1, %127 : vector<8x32xf32>
    %c0_38 = arith.constant 0 : index
    %c0_39 = arith.constant 0 : index
    %129 = vector.load %arg6[%c0_38, %c0_39] : memref<1x32xf32, #tpu.memory_space<vmem>>, vector<1x32xf32>
    %c0_40 = arith.constant 0 : index
    %c0_41 = arith.constant 0 : index
    %130 = vector.load %arg7[%c0_40, %c0_41] : memref<1x32xf32, #tpu.memory_space<vmem>>, vector<1x32xf32>
    %cst_42 = arith.constant dense<0.000000e+00> : vector<8xf32>
    %131 = vector.multi_reduction <add>, %128, %cst_42 [1] : vector<8x32xf32> to vector<8xf32>
    %132 = vector.shape_cast %131 : vector<8xf32> to vector<8x1xf32>
    %cst_43 = arith.constant 3.200000e+01 : f32
    %133 = vector.broadcast %cst_43 : f32 to vector<8x1xf32>
    %134 = arith.divf %132, %133 : vector<8x1xf32>
    %135 = vector.broadcast %134 : vector<8x1xf32> to vector<8x32xf32>
    %136 = arith.subf %128, %135 : vector<8x32xf32>
    %137 = arith.mulf %136, %136 : vector<8x32xf32>
    %cst_44 = arith.constant dense<0.000000e+00> : vector<8xf32>
    %138 = vector.multi_reduction <add>, %137, %cst_44 [1] : vector<8x32xf32> to vector<8xf32>
    %139 = vector.shape_cast %138 : vector<8xf32> to vector<8x1xf32>
    %cst_45 = arith.constant 3.200000e+01 : f32
    %140 = vector.broadcast %cst_45 : f32 to vector<8x1xf32>
    %141 = arith.divf %139, %140 : vector<8x1xf32>
    %142 = vector.broadcast %134 : vector<8x1xf32> to vector<8x32xf32>
    %143 = arith.subf %128, %142 : vector<8x32xf32>
    %cst_46 = arith.constant 9.99999974E-6 : f32
    %144 = vector.broadcast %cst_46 : f32 to vector<8x1xf32>
    %145 = arith.addf %141, %144 : vector<8x1xf32>
    %146 = math.rsqrt %145 : vector<8x1xf32>
    %147 = vector.broadcast %146 : vector<8x1xf32> to vector<8x32xf32>
    %148 = arith.mulf %143, %147 : vector<8x32xf32>
    %149 = vector.broadcast %129 : vector<1x32xf32> to vector<8x32xf32>
    %150 = arith.mulf %148, %149 : vector<8x32xf32>
    %151 = vector.broadcast %130 : vector<1x32xf32> to vector<8x32xf32>
    %152 = arith.addf %150, %151 : vector<8x32xf32>
    %153 = arith.truncf %152 : vector<8x32xf32> to vector<8x32xbf16>
    %c0_47 = arith.constant 0 : index
    %c0_48 = arith.constant 0 : index
    %154 = vector.load %arg8[%c0_47, %c0_48] : memref<32x128xbf16, #tpu.memory_space<vmem>>, vector<32x128xbf16>
    %cst_49 = arith.constant dense<0.000000e+00> : vector<8x128xf32>
    %155 = tpu.matmul %153, %154, %cst_49 {dimension_numbers = #tpu.dot_dimension_numbers<[1], [0], [0], [1], [0, 0, 1, 1], [], []>} : vector<8x32xbf16>, vector<32x128xbf16>, vector<8x128xf32> -> vector<8x128xf32>
    %c0_50 = arith.constant 0 : index
    %c0_51 = arith.constant 0 : index
    %156 = vector.load %arg9[%c0_50, %c0_51] : memref<1x128xf32, #tpu.memory_space<vmem>>, vector<1x128xf32>
    %157 = vector.broadcast %156 : vector<1x128xf32> to vector<8x128xf32>
    %158 = arith.addf %155, %157 : vector<8x128xf32>
    %cst_52 = arith.constant 5.000000e-01 : f32
    %159 = vector.broadcast %cst_52 : f32 to vector<8x128xf32>
    %160 = arith.mulf %159, %158 : vector<8x128xf32>
    %cst_53 = arith.constant 0.707106769 : f32
    %161 = vector.broadcast %cst_53 : f32 to vector<8x128xf32>
    %162 = arith.mulf %158, %161 : vector<8x128xf32>
    %cst_54 = arith.constant 0.000000e+00 : f32
    %163 = vector.broadcast %cst_54 : f32 to vector<8x128xf32>
    %164 = arith.cmpf oge, %162, %163 : vector<8x128xf32>
    %cst_55 = arith.constant 1.000000e+00 : f32
    %cst_56 = arith.constant -1.000000e+00 : f32
    %165 = vector.broadcast %cst_55 : f32 to vector<8x128xf32>
    %166 = vector.broadcast %cst_56 : f32 to vector<8x128xf32>
    %167 = arith.select %164, %165, %166 : vector<8x128xi1>, vector<8x128xf32>
    %168 = math.absf %162 : vector<8x128xf32>
    %cst_57 = arith.constant 0.327591091 : f32
    %169 = vector.broadcast %cst_57 : f32 to vector<8x128xf32>
    %170 = arith.mulf %169, %168 : vector<8x128xf32>
    %cst_58 = arith.constant 1.000000e+00 : f32
    %171 = vector.broadcast %cst_58 : f32 to vector<8x128xf32>
    %172 = arith.addf %171, %170 : vector<8x128xf32>
    %cst_59 = arith.constant 1.000000e+00 : f32
    %173 = vector.broadcast %cst_59 : f32 to vector<8x128xf32>
    %174 = arith.divf %173, %172 : vector<8x128xf32>
    %cst_60 = arith.constant 1.06140542 : f32
    %175 = vector.broadcast %cst_60 : f32 to vector<8x128xf32>
    %176 = arith.mulf %175, %174 : vector<8x128xf32>
    %cst_61 = arith.constant -1.45315206 : f32
    %177 = vector.broadcast %cst_61 : f32 to vector<8x128xf32>
    %178 = arith.addf %176, %177 : vector<8x128xf32>
    %179 = arith.mulf %178, %174 : vector<8x128xf32>
    %cst_62 = arith.constant 1.42141378 : f32
    %180 = vector.broadcast %cst_62 : f32 to vector<8x128xf32>
    %181 = arith.addf %179, %180 : vector<8x128xf32>
    %182 = arith.mulf %181, %174 : vector<8x128xf32>
    %cst_63 = arith.constant -0.284496725 : f32
    %183 = vector.broadcast %cst_63 : f32 to vector<8x128xf32>
    %184 = arith.addf %182, %183 : vector<8x128xf32>
    %185 = arith.mulf %184, %174 : vector<8x128xf32>
    %cst_64 = arith.constant 0.254829586 : f32
    %186 = vector.broadcast %cst_64 : f32 to vector<8x128xf32>
    %187 = arith.addf %185, %186 : vector<8x128xf32>
    %188 = arith.mulf %187, %174 : vector<8x128xf32>
    %cst_65 = arith.constant 0.000000e+00 : f32
    %189 = vector.broadcast %cst_65 : f32 to vector<8x128xf32>
    %190 = arith.subf %189, %168 : vector<8x128xf32>
    %191 = arith.mulf %190, %168 : vector<8x128xf32>
    %192 = math.exp %191 : vector<8x128xf32>
    %193 = arith.mulf %188, %192 : vector<8x128xf32>
    %cst_66 = arith.constant 1.000000e+00 : f32
    %194 = vector.broadcast %cst_66 : f32 to vector<8x128xf32>
    %195 = arith.subf %194, %193 : vector<8x128xf32>
    %196 = arith.mulf %167, %195 : vector<8x128xf32>
    %cst_67 = arith.constant 1.000000e+00 : f32
    %197 = vector.broadcast %cst_67 : f32 to vector<8x128xf32>
    %198 = arith.addf %197, %196 : vector<8x128xf32>
    %199 = arith.mulf %160, %198 : vector<8x128xf32>
    %200 = arith.truncf %199 : vector<8x128xf32> to vector<8x128xbf16>
    %c0_68 = arith.constant 0 : index
    %c0_69 = arith.constant 0 : index
    %201 = vector.load %arg10[%c0_68, %c0_69] : memref<128x32xbf16, #tpu.memory_space<vmem>>, vector<128x32xbf16>
    %cst_70 = arith.constant dense<0.000000e+00> : vector<8x32xf32>
    %202 = tpu.matmul %200, %201, %cst_70 {dimension_numbers = #tpu.dot_dimension_numbers<[1], [0], [0], [1], [0, 0, 1, 1], [], []>} : vector<8x128xbf16>, vector<128x32xbf16>, vector<8x32xf32> -> vector<8x32xf32>
    %c0_71 = arith.constant 0 : index
    %c0_72 = arith.constant 0 : index
    %203 = vector.load %arg11[%c0_71, %c0_72] : memref<1x32xf32, #tpu.memory_space<vmem>>, vector<1x32xf32>
    %204 = vector.broadcast %203 : vector<1x32xf32> to vector<8x32xf32>
    %205 = arith.addf %202, %204 : vector<8x32xf32>
    %206 = arith.addf %128, %205 : vector<8x32xf32>
    %207 = vector.shape_cast %206 : vector<8x32xf32> to vector<1x8x32xf32>
    %c0_73 = arith.constant 0 : index
    %c0_74 = arith.constant 0 : index
    %c0_75 = arith.constant 0 : index
    %208 = vector.load %arg12[%c0_73, %c0_74, %c0_75] : memref<1x8x32xf32, #tpu.memory_space<vmem>>, vector<1x8x32xf32>
    tpu.vector_store %arg12[%c0_73, %c0_74, %c0_75], %207 {strides = array<i32>} : memref<1x8x32xf32, #tpu.memory_space<vmem>>, vector<1x8x32xf32>,
    return
  }
  func.func @transform_0(%arg0: i32) -> (i32, i32, i32) {
    %c0_i32 = arith.constant 0 : i32
    %c0_i32_0 = arith.constant 0 : i32
    %c0_i32_1 = arith.constant 0 : i32
    return %arg0, %c0_i32, %c0_i32_0 : i32, i32, i32
  }
  func.func @transform_1(%arg0: i32) -> (i32, i32) {
    %c0_i32 = arith.constant 0 : i32
    %c0_i32_0 = arith.constant 0 : i32
    %c0_i32_1 = arith.constant 0 : i32
    return %c0_i32, %c0_i32_0 : i32, i32
  }
  func.func @transform_2(%arg0: i32) -> (i32, i32) {
    %c0_i32 = arith.constant 0 : i32
    %c0_i32_0 = arith.constant 0 : i32
    %c0_i32_1 = arith.constant 0 : i32
    return %c0_i32, %c0_i32_0 : i32, i32
  }
  func.func @transform_3(%arg0: i32) -> (i32, i32) {
    %c0_i32 = arith.constant 0 : i32
    %c0_i32_0 = arith.constant 0 : i32
    %c0_i32_1 = arith.constant 0 : i32
    return %c0_i32, %c0_i32_0 : i32, i32
  }
  func.func @transform_4(%arg0: i32) -> (i32, i32) {
    %c0_i32 = arith.constant 0 : i32
    %c0_i32_0 = arith.constant 0 : i32
    %c0_i32_1 = arith.constant 0 : i32
    return %c0_i32, %c0_i32_0 : i32, i32
  }
  func.func @transform_5(%arg0: i32) -> (i32, i32) {
    %c0_i32 = arith.constant 0 : i32
    %c0_i32_0 = arith.constant 0 : i32
    %c0_i32_1 = arith.constant 0 : i32
    return %c0_i32, %c0_i32_0 : i32, i32
  }
  func.func @transform_6(%arg0: i32) -> (i32, i32) {
    %c0_i32 = arith.constant 0 : i32
    %c0_i32_0 = arith.constant 0 : i32
    %c0_i32_1 = arith.constant 0 : i32
    return %c0_i32, %c0_i32_0 : i32, i32
  }
  func.func @transform_7(%arg0: i32) -> (i32, i32) {
    %c0_i32 = arith.constant 0 : i32
    %c0_i32_0 = arith.constant 0 : i32
    %c0_i32_1 = arith.constant 0 : i32
    return %c0_i32, %c0_i32_0 : i32, i32
  }
  func.func @transform_8(%arg0: i32) -> (i32, i32) {
    %c0_i32 = arith.constant 0 : i32
    %c0_i32_0 = arith.constant 0 : i32
    %c0_i32_1 = arith.constant 0 : i32
    return %c0_i32, %c0_i32_0 : i32, i32
  }
  func.func @transform_9(%arg0: i32) -> (i32, i32) {
    %c0_i32 = arith.constant 0 : i32
    %c0_i32_0 = arith.constant 0 : i32
    %c0_i32_1 = arith.constant 0 : i32
    return %c0_i32, %c0_i32_0 : i32, i32
  }
  func.func @transform_10(%arg0: i32) -> (i32, i32) {
    %c0_i32 = arith.constant 0 : i32
    %c0_i32_0 = arith.constant 0 : i32
    %c0_i32_1 = arith.constant 0 : i32
    return %c0_i32, %c0_i32_0 : i32, i32
  }
  func.func @transform_11(%arg0: i32) -> (i32, i32, i32) {
    %c0_i32 = arith.constant 0 : i32
    %c0_i32_0 = arith.constant 0 : i32
    %c0_i32_1 = arith.constant 0 : i32
    return %arg0, %c0_i32, %c0_i32_0 : i32, i32, i32
  }
}

</mosaic_0001>

<llo_original>
// kernel: tpu_custom_call.1
$region0: #{tpu_custom_call.1}
  #allocation0 [shape = 'u32[]', space=smem, size = 0x4, offset = 0x4, fixed_abs, tag = 'smem constant byte address 0x4 - core index']
  #allocation1 [shape = 'u32[144,128]{1,0:T(1,128)}', space=vmem, size = 0x12000, scoped, tag = 'internal scratch']
  %s0 = inlined_call_operand.vmem [shape: f32[2,8,32], index: 0, kind: input, shape index: {}]
  %s1 = inlined_call_operand.vmem [shape: f32[1,32], index: 1, kind: input, shape index: {}]
  %s2 = inlined_call_operand.vmem [shape: f32[1,32], index: 2, kind: input, shape index: {}]
  %s3 = inlined_call_operand.vmem [shape: bf16[32,96], index: 3, kind: input, shape index: {}]
  %s4 = inlined_call_operand.vmem [shape: bf16[32,32], index: 4, kind: input, shape index: {}]
  %s5 = inlined_call_operand.vmem [shape: f32[1,32], index: 5, kind: input, shape index: {}]
  %s6 = inlined_call_operand.vmem [shape: f32[1,32], index: 6, kind: input, shape index: {}]
  %s7 = inlined_call_operand.vmem [shape: bf16[32,128], index: 7, kind: input, shape index: {}]
  %s8 = inlined_call_operand.vmem [shape: f32[1,128], index: 8, kind: input, shape index: {}]
  %s9 = inlined_call_operand.vmem [shape: bf16[128,32], index: 9, kind: input, shape index: {}]
  %s10 = inlined_call_operand.vmem [shape: f32[1,32], index: 10, kind: input, shape index: {}]
  %s11 = inlined_call_operand.hbm [shape: f32[2,8,32], index: 11, kind: output, shape index: {}]
  %s12 = sld [smem:[#allocation0]]
  $region77: #{tpu_custom_call.1} parent=0
    _
  %s14 = ssub.s32 1, %s12
  %s15 = scalar_select 0, %s14, %s12
  $region1: #{tpu_custom_call.1} parent=0
    #allocation2 [shape = 'u8[8192]{0}', space=vmem, size = 0x2000, scoped, tag = 'output window, operand 0']
    #allocation3 [shape = 's32[2]{0}', space=sflag, size = 0x8, scoped, tag = 'scoped memory for tpu_custom_call.1']
    %16 = vsyncpa [#allocation3], 0
    %s17 = scalar_lea.sflag [#allocation3], 1
    %18 = vsyncpa %s17, 0
    loop: start=0, step=1, limit=4
    $region2: #{tpu_custom_call.1} parent=1 // loop_pre_header
      _
    $region3: #{tpu_custom_call.1} parent=1 // loop_header
      %s20 = sphi 0, %s24
      %p21 = scmp.ge.s32.totalorder %s20, 4
      %s30 = sphi 0, %s32
      %s33 = sphi 0, %s30
      %s34 = sphi 0, %s33
      %s50 = sphi 0, %s34
      %s54 = sphi 0, %s54
      %s56 = sphi 0, %s54
      %s57 = sphi 0, %s56
      %s71 = sphi 0, %s57
      %s75 = sphi 0, %s75
      %s77 = sphi 0, %s75
      %s78 = sphi 0, %s77
      %s92 = sphi 0, %s78
      %s96 = sphi 0, %s96
      %s98 = sphi 0, %s96
      %s99 = sphi 0, %s98
      %s113 = sphi 0, %s99
      %s117 = sphi 0, %s117
      %s119 = sphi 0, %s117
      %s120 = sphi 0, %s119
      %s134 = sphi 0, %s120
      %s138 = sphi 0, %s138
      %s140 = sphi 0, %s138
      %s141 = sphi 0, %s140
      %s155 = sphi 0, %s141
      %s159 = sphi 0, %s159
      %s161 = sphi 0, %s159
      %s162 = sphi 0, %s161
      %s176 = sphi 0, %s162
      %s180 = sphi 0, %s180
      %s182 = sphi 0, %s180
      %s183 = sphi 0, %s182
      %s197 = sphi 0, %s183
      %s201 = sphi 0, %s201
      %s203 = sphi 0, %s201
      %s204 = sphi 0, %s203
      %s218 = sphi 0, %s204
      %s222 = sphi 0, %s222
      %s224 = sphi 0, %s222
      %s225 = sphi 0, %s224
      %s239 = sphi 0, %s225
      %s243 = sphi 0, %s243
      %s245 = sphi 0, %s243
      %s246 = sphi 0, %s245
      %s260 = sphi 0, %s246
      %s266 = sphi 0, %s268
      %s269 = sphi 0, %s266
      %s270 = sphi 0, %s269
      %s286 = sphi 0, %s270
    $region4: #{tpu_custom_call.1} parent=1 // loop_header_branch
      %23 = sbr.rel (%p21) target = $region8
    $region5: #{tpu_custom_call.1} parent=1 // loop_body
      %s25 = ssub.s32 %s20, 1
      %s26 = ssub.s32 %s20, 2
      %s27 = sadd.s32 %s20, 1
      %s28 = ssub.s32 %s20, %s27
      %p29 = scmp.eq.s32.totalorder %s28, 0
      %s31 = sadd.s32 %s30, 1
      %s32 = scalar_select %p29, %s30, %s31
      %p35 = pneg %p29
      %p36 = scmp.eq.s32.totalorder %s20, 1
      %p37 = por %p35, %p36
      %p38 = scmp.ne.s32.totalorder %s30, %s33
      %p39 = scmp.eq.s32.totalorder %s20, 0
      %p40 = por %p38, %p39
      %p41 = scmp.ne.s32.totalorder %s30, %s33
      %p42 = scmp.eq.s32.totalorder %s25, 1
      %p43 = por %p41, %p42
      %p44 = scmp.ne.s32.totalorder %s33, %s34
      %p45 = scmp.eq.s32.totalorder %s25, 0
      %p46 = por %p44, %p45
      %p47 = scmp.ne.s32.totalorder %s33, %s34
      %p48 = scmp.eq.s32.totalorder %s26, 1
      %p49 = por %p47, %p48
      %p51 = scmp.ne.s32.totalorder %s34, %s50
      %p52 = scmp.eq.s32.totalorder %s26, 0
      %p53 = por %p51, %p52
      %s55 = sadd.s32 %s54, 1
      %p58 = scmp.eq.s32.totalorder %s20, 1
      %p59 = scmp.ne.s32.totalorder %s54, %s56
      %p60 = scmp.eq.s32.totalorder %s20, 0
      %p61 = por %p59, %p60
      %p62 = scmp.ne.s32.totalorder %s54, %s56
      %p63 = scmp.eq.s32.totalorder %s25, 1
      %p64 = por %p62, %p63
      %p65 = scmp.ne.s32.totalorder %s56, %s57
      %p66 = scmp.eq.s32.totalorder %s25, 0
      %p67 = por %p65, %p66
      %p68 = scmp.ne.s32.totalorder %s56, %s57
      %p69 = scmp.eq.s32.totalorder %s26, 1
      %p70 = por %p68, %p69
      %p72 = scmp.ne.s32.totalorder %s57, %s71
      %p73 = scmp.eq.s32.totalorder %s26, 0
      %p74 = por %p72, %p73
      %s76 = sadd.s32 %s75, 1
      %p79 = scmp.eq.s32.totalorder %s20, 1
      %p80 = scmp.ne.s32.totalorder %s75, %s77
      %p81 = scmp.eq.s32.totalorder %s20, 0
      %p82 = por %p80, %p81
      %p83 = scmp.ne.s32.totalorder %s75, %s77
      %p84 = scmp.eq.s32.totalorder %s25, 1
      %p85 = por %p83, %p84
      %p86 = scmp.ne.s32.totalorder %s77, %s78
      %p87 = scmp.eq.s32.totalorder %s25, 0
      %p88 = por %p86, %p87
      %p89 = scmp.ne.s32.totalorder %s77, %s78
      %p90 = scmp.eq.s32.totalorder %s26, 1
      %p91 = por %p89, %p90
      %p93 = scmp.ne.s32.totalorder %s78, %s92
      %p94 = scmp.eq.s32.totalorder %s26, 0
      %p95 = por %p93, %p94
      %s97 = sadd.s32 %s96, 1
      %p100 = scmp.eq.s32.totalorder %s20, 1
      %p101 = scmp.ne.s32.totalorder %s96, %s98
      %p102 = scmp.eq.s32.totalorder %s20, 0
      %p103 = por %p101, %p102
      %p104 = scmp.ne.s32.totalorder %s96, %s98
      %p105 = scmp.eq.s32.totalorder %s25, 1
      %p106 = por %p104, %p105
      %p107 = scmp.ne.s32.totalorder %s98, %s99
      %p108 = scmp.eq.s32.totalorder %s25, 0
      %p109 = por %p107, %p108
      %p110 = scmp.ne.s32.totalorder %s98, %s99
      %p111 = scmp.eq.s32.totalorder %s26, 1
      %p112 = por %p110, %p111
      %p114 = scmp.ne.s32.totalorder %s99, %s113
      %p115 = scmp.eq.s32.totalorder %s26, 0
      %p116 = por %p114, %p115
      %s118 = sadd.s32 %s117, 1
      %p121 = scmp.eq.s32.totalorder %s20, 1
      %p122 = scmp.ne.s32.totalorder %s117, %s119
      %p123 = scmp.eq.s32.totalorder %s20, 0
      %p124 = por %p122, %p123
      %p125 = scmp.ne.s32.totalorder %s117, %s119
      %p126 = scmp.eq.s32.totalorder %s25, 1
      %p127 = por %p125, %p126
      %p128 = scmp.ne.s32.totalorder %s119, %s120
      %p129 = scmp.eq.s32.totalorder %s25, 0
      %p130 = por %p128, %p129
      %p131 = scmp.ne.s32.totalorder %s119, %s120
      %p132 = scmp.eq.s32.totalorder %s26, 1
      %p133 = por %p131, %p132
      %p135 = scmp.ne.s32.totalorder %s120, %s134
      %p136 = scmp.eq.s32.totalorder %s26, 0
      %p137 = por %p135, %p136
      %s139 = sadd.s32 %s138, 1
      %p142 = scmp.eq.s32.totalorder %s20, 1
      %p143 = scmp.ne.s32.totalorder %s138, %s140
      %p144 = scmp.eq.s32.totalorder %s20, 0
      %p145 = por %p143, %p144
      %p146 = scmp.ne.s32.totalorder %s138, %s140
      %p147 = scmp.eq.s32.totalorder %s25, 1
      %p148 = por %p146, %p147
      %p149 = scmp.ne.s32.totalorder %s140, %s141
      %p150 = scmp.eq.s32.totalorder %s25, 0
      %p151 = por %p149, %p150
      %p152 = scmp.ne.s32.totalorder %s140, %s141
      %p153 = scmp.eq.s32.totalorder %s26, 1
      %p154 = por %p152, %p153
      %p156 = scmp.ne.s32.totalorder %s141, %s155
      %p157 = scmp.eq.s32.totalorder %s26, 0
      %p158 = por %p156, %p157
      %s160 = sadd.s32 %s159, 1
      %p163 = scmp.eq.s32.totalorder %s20, 1
      %p164 = scmp.ne.s32.totalorder %s159, %s161
      %p165 = scmp.eq.s32.totalorder %s20, 0
      %p166 = por %p164, %p165
      %p167 = scmp.ne.s32.totalorder %s159, %s161
      %p168 = scmp.eq.s32.totalorder %s25, 1
      %p169 = por %p167, %p168
      %p170 = scmp.ne.s32.totalorder %s161, %s162
      %p171 = scmp.eq.s32.totalorder %s25, 0
      %p172 = por %p170, %p171
      %p173 = scmp.ne.s32.totalorder %s161, %s162
      %p174 = scmp.eq.s32.totalorder %s26, 1
      %p175 = por %p173, %p174
      %p177 = scmp.ne.s32.totalorder %s162, %s176
      %p178 = scmp.eq.s32.totalorder %s26, 0
      %p179 = por %p177, %p178
      %s181 = sadd.s32 %s180, 1
      %p184 = scmp.eq.s32.totalorder %s20, 1
      %p185 = scmp.ne.s32.totalorder %s180, %s182
      %p186 = scmp.eq.s32.totalorder %s20, 0
      %p187 = por %p185, %p186
      %p188 = scmp.ne.s32.totalorder %s180, %s182
      %p189 = scmp.eq.s32.totalorder %s25, 1
      %p190 = por %p188, %p189
      %p191 = scmp.ne.s32.totalorder %s182, %s183
      %p192 = scmp.eq.s32.totalorder %s25, 0
      %p193 = por %p191, %p192
      %p194 = scmp.ne.s32.totalorder %s182, %s183
      %p195 = scmp.eq.s32.totalorder %s26, 1
      %p196 = por %p194, %p195
      %p198 = scmp.ne.s32.totalorder %s183, %s197
      %p199 = scmp.eq.s32.totalorder %s26, 0
      %p200 = por %p198, %p199
      %s202 = sadd.s32 %s201, 1
      %p205 = scmp.eq.s32.totalorder %s20, 1
      %p206 = scmp.ne.s32.totalorder %s201, %s203
      %p207 = scmp.eq.s32.totalorder %s20, 0
      %p208 = por %p206, %p207
      %p209 = scmp.ne.s32.totalorder %s201, %s203
      %p210 = scmp.eq.s32.totalorder %s25, 1
      %p211 = por %p209, %p210
      %p212 = scmp.ne.s32.totalorder %s203, %s204
      %p213 = scmp.eq.s32.totalorder %s25, 0
      %p214 = por %p212, %p213
      %p215 = scmp.ne.s32.totalorder %s203, %s204
      %p216 = scmp.eq.s32.totalorder %s26, 1
      %p217 = por %p215, %p216
      %p219 = scmp.ne.s32.totalorder %s204, %s218
      %p220 = scmp.eq.s32.totalorder %s26, 0
      %p221 = por %p219, %p220
      %s223 = sadd.s32 %s222, 1
      %p226 = scmp.eq.s32.totalorder %s20, 1
      %p227 = scmp.ne.s32.totalorder %s222, %s224
      %p228 = scmp.eq.s32.totalorder %s20, 0
      %p229 = por %p227, %p228
      %p230 = scmp.ne.s32.totalorder %s222, %s224
      %p231 = scmp.eq.s32.totalorder %s25, 1
      %p232 = por %p230, %p231
      %p233 = scmp.ne.s32.totalorder %s224, %s225
      %p234 = scmp.eq.s32.totalorder %s25, 0
      %p235 = por %p233, %p234
      %p236 = scmp.ne.s32.totalorder %s224, %s225
      %p237 = scmp.eq.s32.totalorder %s26, 1
      %p238 = por %p236, %p237
      %p240 = scmp.ne.s32.totalorder %s225, %s239
      %p241 = scmp.eq.s32.totalorder %s26, 0
      %p242 = por %p240, %p241
      %s244 = sadd.s32 %s243, 1
      %p247 = scmp.eq.s32.totalorder %s20, 1
      %p248 = scmp.ne.s32.totalorder %s243, %s245
      %p249 = scmp.eq.s32.totalorder %s20, 0
      %p250 = por %p248, %p249
      %p251 = scmp.ne.s32.totalorder %s243, %s245
      %p252 = scmp.eq.s32.totalorder %s25, 1
      %p253 = por %p251, %p252
      %p254 = scmp.ne.s32.totalorder %s245, %s246
      %p255 = scmp.eq.s32.totalorder %s25, 0
      %p256 = por %p254, %p255
      %p257 = scmp.ne.s32.totalorder %s245, %s246
      %p258 = scmp.eq.s32.totalorder %s26, 1
      %p259 = por %p257, %p258
      %p261 = scmp.ne.s32.totalorder %s246, %s260
      %p262 = scmp.eq.s32.totalorder %s26, 0
      %p263 = por %p261, %p262
      %s264 = ssub.s32 %s20, %s27
      %p265 = scmp.eq.s32.totalorder %s264, 0
      %s267 = sadd.s32 %s266, 1
      %s268 = scalar_select %p265, %s266, %s267
      %p271 = pneg %p265
      %p272 = scmp.eq.s32.totalorder %s20, 1
      %p273 = por %p271, %p272
      %p274 = scmp.ne.s32.totalorder %s266, %s269
      %p275 = scmp.eq.s32.totalorder %s20, 0
      %p276 = por %p274, %p275
      %p277 = scmp.ne.s32.totalorder %s266, %s269
      %p278 = scmp.eq.s32.totalorder %s25, 1
      %p279 = por %p277, %p278
      %p280 = scmp.ne.s32.totalorder %s269, %s270
      %p281 = scmp.eq.s32.totalorder %s25, 0
      %p282 = por %p280, %p281
      %p283 = scmp.ne.s32.totalorder %s269, %s270
      %p284 = scmp.eq.s32.totalorder %s26, 1
      %p285 = por %p283, %p284
      %p287 = scmp.ne.s32.totalorder %s270, %s286
      %p288 = scmp.eq.s32.totalorder %s26, 0
      %p289 = por %p287, %p288
      %p290 = scmp.le.s32.totalorder 1, %s20
      %p291 = scmp.lt.s32.totalorder %s20, 3
      %p292 = pnand %p290, %p291
      %p293 = pneg %p292
      // Predicated region
      $region9: #{tpu_custom_call.1} parent=5 // pred_check
        _
      $region10: #{tpu_custom_call.1} parent=5 // pred_check_branch
        %295 = sbr.rel (%p292) target = $region12
      $region11: #{tpu_custom_call.1} parent=5 // pred_region
        %s296 = ssub.s32 %s20, 1
        // Predicated region
        $region13: #{tpu_custom_call.1} parent=11 // pred_check
          %p297 = pneg %p67
        $region14: #{tpu_custom_call.1} parent=11 // pred_check_branch
          %299 = sbr.rel (%p297) target = $region16
        $region15: #{tpu_custom_call.1} parent=11 // pred_region
          _
        $region16: #{tpu_custom_call.1} parent=11 // pred_fallthru
          _
        // Predicated region
        $region17: #{tpu_custom_call.1} parent=11 // pred_check
          %p300 = pneg %p88
        $region18: #{tpu_custom_call.1} parent=11 // pred_check_branch
          %302 = sbr.rel (%p300) target = $region20
        $region19: #{tpu_custom_call.1} parent=11 // pred_region
          _
        $region20: #{tpu_custom_call.1} parent=11 // pred_fallthru
          _
        // Predicated region
        $region21: #{tpu_custom_call.1} parent=11 // pred_check
          %p303 = pneg %p109
        $region22: #{tpu_custom_call.1} parent=11 // pred_check_branch
          %305 = sbr.rel (%p303) target = $region24
        $region23: #{tpu_custom_call.1} parent=11 // pred_region
          _
        $region24: #{tpu_custom_call.1} parent=11 // pred_fallthru
          _
        // Predicated region
        $region25: #{tpu_custom_call.1} parent=11 // pred_check
          %p306 = pneg %p130
        $region26: #{tpu_custom_call.1} parent=11 // pred_check_branch
          %308 = sbr.rel (%p306) target = $region28
        $region27: #{tpu_custom_call.1} parent=11 // pred_region
          _
        $region28: #{tpu_custom_call.1} parent=11 // pred_fallthru
          _
        // Predicated region
        $region29: #{tpu_custom_call.1} parent=11 // pred_check
          %p309 = pneg %p151
        $region30: #{tpu_custom_call.1} parent=11 // pred_check_branch
          %311 = sbr.rel (%p309) target = $region32
        $region31: #{tpu_custom_call.1} parent=11 // pred_region
          _
        $region32: #{tpu_custom_call.1} parent=11 // pred_fallthru
          _
        // Predicated region
        $region33: #{tpu_custom_call.1} parent=11 // pred_check
          %p312 = pneg %p172
        $region34: #{tpu_custom_call.1} parent=11 // pred_check_branch
          %314 = sbr.rel (%p312) target = $region36
        $region35: #{tpu_custom_call.1} parent=11 // pred_region
          _
        $region36: #{tpu_custom_call.1} parent=11 // pred_fallthru
          _
        // Predicated region
        $region37: #{tpu_custom_call.1} parent=11 // pred_check
          %p315 = pneg %p193
        $region38: #{tpu_custom_call.1} parent=11 // pred_check_branch
          %317 = sbr.rel (%p315) target = $region40
        $region39: #{tpu_custom_call.1} parent=11 // pred_region
          _
        $region40: #{tpu_custom_call.1} parent=11 // pred_fallthru
          _
        // Predicated region
        $region41: #{tpu_custom_call.1} parent=11 // pred_check
          %p318 = pneg %p214
        $region42: #{tpu_custom_call.1} parent=11 // pred_check_branch
          %320 = sbr.rel (%p318) target = $region44
        $region43: #{tpu_custom_call.1} parent=11 // pred_region
          _
        $region44: #{tpu_custom_call.1} parent=11 // pred_fallthru
          _
        // Predicated region
        $region45: #{tpu_custom_call.1} parent=11 // pred_check
          %p321 = pneg %p235
        $region46: #{tpu_custom_call.1} parent=11 // pred_check_branch
          %323 = sbr.rel (%p321) target = $region48
        $region47: #{tpu_custom_call.1} parent=11 // pred_region
          _
        $region48: #{tpu_custom_call.1} parent=11 // pred_fallthru
          _
        // Predicated region
        $region49: #{tpu_custom_call.1} parent=11 // pred_check
          %p324 = pneg %p256
        $region50: #{tpu_custom_call.1} parent=11 // pred_check_branch
          %326 = sbr.rel (%p324) target = $region52
        $region51: #{tpu_custom_call.1} parent=11 // pred_region
          _
        $region52: #{tpu_custom_call.1} parent=11 // pred_fallthru
          _
      $region12: #{tpu_custom_call.1} parent=5 // pred_fallthru
        _
      %p327 = scmp.lt.s32.totalorder %s20, 2
      // Predicated region
      $region53: #{tpu_custom_call.1} parent=5 // pred_check
        %p328 = pneg %p327
      $region54: #{tpu_custom_call.1} parent=5 // pred_check_branch
        %330 = sbr.rel (%p328) target = $region56
      $region55: #{tpu_custom_call.1} parent=5 // pred_region
        // Predicated region
        $region57: #{tpu_custom_call.1} parent=55 // pred_check
          %p331 = pneg %p40
        $region58: #{tpu_custom_call.1} parent=55 // pred_check_branch
          %333 = sbr.rel (%p331) target = $region60
        $region59: #{tpu_custom_call.1} parent=55 // pred_region
          %p334 = scmp.lt.s32.totalorder %s20, 1
          %s335 = scalar_select %p334, %s20, 1
          %s336 = smul.addr %s335, 8
          %s337 = scalar_lea.vmem %s0, %s336
        $region60: #{tpu_custom_call.1} parent=55 // pred_fallthru
          _
      $region56: #{tpu_custom_call.1} parent=5 // pred_fallthru
        _
      %p338 = scmp.le.s32.totalorder 1, %s20
      %p339 = scmp.lt.s32.totalorder %s20, 3
      %p340 = pnand %p338, %p339
      %p341 = pneg %p340
      // Predicated region
      $region61: #{tpu_custom_call.1} parent=5 // pred_check
        _
      $region62: #{tpu_custom_call.1} parent=5 // pred_check_branch
        %343 = sbr.rel (%p340) target = $region64
      $region63: #{tpu_custom_call.1} parent=5 // pred_region
        %s344 = ssub.s32 %s20, 1
        %p345 = scmp.lt.s32.totalorder %s25, 1
        %s346 = scalar_select %p345, %s25, 1
        %s347 = smul.addr %s346, 8
        %s348 = scalar_lea.vmem %s0, %s347
        %p349 = pneg %p46
        %p350 = pneg %p43
        %p351 = pneg %p67
        %p352 = pneg %p64
        %p353 = pneg %p88
        %p354 = pneg %p85
        %p355 = pneg %p109
        %p356 = pneg %p106
        %p357 = pneg %p130
        %p358 = pneg %p127
        %p359 = pneg %p151
        %p360 = pneg %p148
        %p361 = pneg %p172
        %p362 = pneg %p169
        %p363 = pneg %p193
        %p364 = pneg %p190
        %p365 = pneg %p214
        %p366 = pneg %p211
        %p367 = pneg %p235
        %p368 = pneg %p232
        %p369 = pneg %p256
        %p370 = pneg %p253
        %p371 = pneg %p282
        %p372 = pneg %p279
        %s373 = sand.u32 %s269, 1
        %s374 = scalar_lea.sflag [#allocation3], %s373
        %s375 = sand.u32 %s269, 1
        %s376 = smul.addr %s375, 8
        %s377 = scalar_lea.vmem [#allocation2], %s376
        %p378 = scmp.lt.s32.totalorder %s25, 1
        %s379 = scalar_select %p378, %s25, 1
        %s380 = smul.addr %s379, 8
        %s381 = scalar_lea.vmem %s0, %s380
        %v383 = vld [vmem:[%s381] sm:$0xff]
        %v384 = vld [vmem:[%s1] sm:$0x1]
        %v385 = vld [vmem:[%s2] sm:$0x1]
        %vm386 = vcmask 261120
        %v387 = vsel %vm386, %v383, 0.0
        %388 = vadd.xlane.f32.xlu0 %v387
        %v389 = vpop.xlane.xlu0 %388
        %v390 = vrcp.pop 32.0
        %v391 = vmul.f32 %v389, %v390
        %v392 = vsub.f32 %v383, %v391
        %v393 = vmul.f32 %v392, %v392
        %v394 = vsel %vm386, %v393, 0.0
        %395 = vadd.xlane.f32.xlu0 %v394
        %v396 = vpop.xlane.xlu0 %395
        %v397 = vmul.f32 %v396, %v390
        %v398 = vadd.f32 %v397, 1e-05
        %v399 = vrsqrt.pop %v398
        %v400 = vmul.f32 %v392, %v399
        %v402 = vlaneseq
        %v403 = vshrl.u32 %v402, 7
        %v404 = vsub.s32 0, %v403
        %v405 = vrot.slane %v384, %v404
        %v407 = vmul.f32 %v400, %v405
        %v409 = vlaneseq
        %v410 = vshrl.u32 %v409, 7
        %v411 = vsub.s32 0, %v410
        %v412 = vrot.slane %v385, %v411
        %v414 = vadd.f32 %v407, %v412
        %v415 = vpack.c.bf16 %v414, %v414
        %v416 = vld [vmem:[%s3] sm:$0xf]
        %v417 = vld [vmem:[%s3 + $0x4] sm:$0xf]
        %v418 = vld [vmem:[%s3 + $0x8] sm:$0xf]
        %v419 = vld [vmem:[%s3 + $0xc] sm:$0xf]
        %v424 = vunpack.c.l.b16 %v416
        %v425 = vunpack.c.l.b16 %v417
        %v426 = vunpack.c.l.b16 %v418
        %v427 = vunpack.c.l.b16 %v419
        %v428 = vpack.c.b16 %v425, %v424
        %v429 = vpack.c.b16 %v427, %v426
        %v433 = vsel %vm386, %v415, 0
        %435 = vmatprep.subr.bf16.mxu0 0
        %436 = vmatpush1.bf16.msra.mxu0 0
        %437 = vmatprep.subr.bf16.mxu0 0
        %438 = vmatpush1.bf16.msra.mxu0 0
        %439 = vmatprep.subr.bf16.mxu0 0
        %440 = vmatpush1.bf16.msra.mxu0 0
        %441 = vmatprep.subr.bf16.mxu0 0
        %442 = vmatpush1.bf16.msra.mxu0 0
        %443 = vmatprep.subr.bf16.mxu0 0
        %444 = vmatpush1.bf16.msra.mxu0 0
        %445 = vmatprep.subr.bf16.mxu0 0
        %446 = vmatpush1.bf16.msra.mxu0 0
        %447 = vmatprep.subr.bf16.mxu0 0
        %448 = vmatpush1.bf16.msra.mxu0 %v429
        %449 = vmatprep.subr.bf16.mxu0 0
        %450 = vmatpush1.bf16.msra.mxu0 %v428
        %451 = vmatprep.subr.bf16.mxu0 0
        %452 = vmatpush2.bf16.msra.mxu0 0
        %453 = vmatprep.subr.bf16.mxu0 0
        %454 = vmatpush2.bf16.msra.mxu0 0
        %455 = vmatprep.subr.bf16.mxu0 0
        %456 = vmatpush2.bf16.msra.mxu0 0
        %457 = vmatprep.subr.bf16.mxu0 0
        %458 = vmatpush2.bf16.msra.mxu0 0
        %459 = vmatprep.subr.bf16.mxu0 0
        %460 = vmatpush2.bf16.msra.mxu0 0
        %461 = vmatprep.subr.bf16.mxu0 0
        %462 = vmatpush2.bf16.msra.mxu0 0
        %463 = vmatprep.subr.bf16.mxu0 0
        %464 = vmatpush2.bf16.msra.mxu0 0
        %465 = vmatprep.subr.bf16.mxu0 0
        %466 = vmatpush2.bf16.msra.mxu0 0
        %467 = vmatprep.mubr.bf16.mxu0 0
        %468 = vmatmul.mubr.bf16.gmra.mxu0 %v433
        %v469 = vpop.f32.mrf.mxu0
        %v470 = vadd.f32 0.0, %v469
        %v471 = vpop.f32.mrf.mxu0
        %v472 = vpop.f32.mrf.mxu0
        %v473 = vpop.f32.mrf.mxu0
        %474 = vdwg.mxu0
        %v475 = vpack.c.bf16 %v470, %v470
        %v476 = vlaneseq
        %v477 = vshrl.u32 %v476, 7
        %v478 = vlaneseq
        %v479 = vand.u32 %v478, 127
        %vm480 = vcmp.le.s32.totalorder %v479, %v477
        %v481 = vsel %vm480, 0.0, -inf
        %483 = vrot.lane.b32.xlu0 %v475, 96
        %v484 = vpop.permute.xlu0 %483
        %vm485 = vcmask 64512
        %v487 = vsel %vm485, %v475, 0
        %v490 = vsel %vm485, %v484, 0
        %492 = vmatprep.subr.bf16.mxu0 0
        %493 = vmatpush1.bf16.xpose.msra.mxu0 0
        %494 = vmatprep.subr.bf16.mxu0 0
        %495 = vmatpush1.bf16.xpose.msra.mxu0 0
        %496 = vmatprep.subr.bf16.mxu0 0
        %497 = vmatpush1.bf16.xpose.msra.mxu0 0
        %498 = vmatprep.subr.bf16.mxu0 0
        %499 = vmatpush1.bf16.xpose.msra.mxu0 0
        %500 = vmatprep.subr.bf16.mxu0 0
        %501 = vmatpush1.bf16.xpose.msra.mxu0 0
        %502 = vmatprep.subr.bf16.mxu0 0
        %503 = vmatpush1.bf16.xpose.msra.mxu0 0
        %504 = vmatprep.subr.bf16.mxu0 0
        %505 = vmatpush1.bf16.xpose.msra.mxu0 0
        %506 = vmatprep.subr.bf16.mxu0 0
        %507 = vmatpush1.bf16.xpose.msra.mxu0 %v490
        %508 = vmatprep.subr.bf16.mxu0 0
        %509 = vmatpush2.bf16.xpose.msra.mxu0 0
        %510 = vmatprep.subr.bf16.mxu0 0
        %511 = vmatpush2.bf16.xpose.msra.mxu0 0
        %512 = vmatprep.subr.bf16.mxu0 0
        %513 = vmatpush2.bf16.xpose.msra.mxu0 0
        %514 = vmatprep.subr.bf16.mxu0 0
        %515 = vmatpush2.bf16.xpose.msra.mxu0 0
        %516 = vmatprep.subr.bf16.mxu0 0
        %517 = vmatpush2.bf16.xpose.msra.mxu0 0
        %518 = vmatprep.subr.bf16.mxu0 0
        %519 = vmatpush2.bf16.xpose.msra.mxu0 0
        %520 = vmatprep.subr.bf16.mxu0 0
        %521 = vmatpush2.bf16.xpose.msra.mxu0 0
        %522 = vmatprep.subr.bf16.mxu0 0
        %523 = vmatpush2.bf16.xpose.msra.mxu0 0
        %524 = vmatprep.mubr.bf16.mxu0 0
        %525 = vmatmul.mubr.bf16.gmra.mxu0 %v487
        %v526 = vpop.f32.mrf.mxu0
        %v527 = vadd.f32 0.0, %v526
        %v528 = vpop.f32.mrf.mxu0
        %v529 = vpop.f32.mrf.mxu0
        %v530 = vpop.f32.mrf.mxu0
        %531 = vdwg.mxu0
        %v532 = vmul.f32 %v527, 0.35355338
        %v533 = vadd.f32 %v532, %v481
        %v534 = vsel %vm485, %v533, -inf
        %535 = vmax.xlane.f32.xlu0 %v534
        %v536 = vpop.xlane.xlu0 %535
        %v537 = vsub.f32 %v533, %v536
        %v538 = vmul.f32 %v537, 1.442695
        %v539 = vpow.pop %v538
        %v540 = vsel %vm485, %v539, 0.0
        %541 = vadd.xlane.f32.xlu0 %v540
        %v542 = vpop.xlane.xlu0 %541
        %v543 = vrcp.pop %v542
        %v544 = vmul.f32 %v539, %v543
        %v545 = vpack.c.bf16 %v544, %v544
        %546 = vrot.lane.b32.xlu0 %v475, 64
        %v547 = vpop.permute.xlu0 %546
        %v549 = vsel %vm485, %v545, 0
        %vm551 = vcmask 1043456
        %v553 = vsel %vm551, %v547, 0
        %555 = vmatprep.subr.bf16.mxu0 0
        %556 = vmatpush1.bf16.msra.mxu0 0
        %557 = vmatprep.subr.bf16.mxu0 0
        %558 = vmatpush1.bf16.msra.mxu0 0
        %559 = vmatprep.subr.bf16.mxu0 0
        %560 = vmatpush1.bf16.msra.mxu0 0
        %561 = vmatprep.subr.bf16.mxu0 0
        %562 = vmatpush1.bf16.msra.mxu0 0
        %563 = vmatprep.subr.bf16.mxu0 0
        %564 = vmatpush1.bf16.msra.mxu0 0
        %565 = vmatprep.subr.bf16.mxu0 0
        %566 = vmatpush1.bf16.msra.mxu0 0
        %567 = vmatprep.subr.bf16.mxu0 0
        %568 = vmatpush1.bf16.msra.mxu0 0
        %569 = vmatprep.subr.bf16.mxu0 0
        %570 = vmatpush1.bf16.msra.mxu0 %v553
        %571 = vmatprep.subr.bf16.mxu0 0
        %572 = vmatpush2.bf16.msra.mxu0 0
        %573 = vmatprep.subr.bf16.mxu0 0
        %574 = vmatpush2.bf16.msra.mxu0 0
        %575 = vmatprep.subr.bf16.mxu0 0
        %576 = vmatpush2.bf16.msra.mxu0 0
        %577 = vmatprep.subr.bf16.mxu0 0
        %578 = vmatpush2.bf16.msra.mxu0 0
        %579 = vmatprep.subr.bf16.mxu0 0
        %580 = vmatpush2.bf16.msra.mxu0 0
        %581 = vmatprep.subr.bf16.mxu0 0
        %582 = vmatpush2.bf16.msra.mxu0 0
        %583 = vmatprep.subr.bf16.mxu0 0
        %584 = vmatpush2.bf16.msra.mxu0 0
        %585 = vmatprep.subr.bf16.mxu0 0
        %586 = vmatpush2.bf16.msra.mxu0 0
        %587 = vmatprep.mubr.bf16.mxu0 0
        %588 = vmatmul.mubr.bf16.gmra.mxu0 %v549
        %v589 = vpop.f32.mrf.mxu0
        %v590 = vadd.f32 0.0, %v589
        %v591 = vpop.f32.mrf.mxu0
        %v592 = vpop.f32.mrf.mxu0
        %v593 = vpop.f32.mrf.mxu0
        %594 = vdwg.mxu0
        %v595 = vpack.c.bf16 %v590, %v590
        %596 = vrot.lane.b32.xlu0 %v475, 120
        %v597 = vpop.permute.xlu0 %596
        %598 = vrot.lane.b32.xlu0 %v475, 88
        %v599 = vpop.permute.xlu0 %598
        %v601 = vsel %vm485, %v597, 0
        %v604 = vsel %vm485, %v599, 0
        %606 = vmatprep.subr.bf16.mxu0 0
        %607 = vmatpush1.bf16.xpose.msra.mxu0 0
        %608 = vmatprep.subr.bf16.mxu0 0
        %609 = vmatpush1.bf16.xpose.msra.mxu0 0
        %610 = vmatprep.subr.bf16.mxu0 0
        %611 = vmatpush1.bf16.xpose.msra.mxu0 0
        %612 = vmatprep.subr.bf16.mxu0 0
        %613 = vmatpush1.bf16.xpose.msra.mxu0 0
        %614 = vmatprep.subr.bf16.mxu0 0
        %615 = vmatpush1.bf16.xpose.msra.mxu0 0
        %616 = vmatprep.subr.bf16.mxu0 0
        %617 = vmatpush1.bf16.xpose.msra.mxu0 0
        %618 = vmatprep.subr.bf16.mxu0 0
        %619 = vmatpush1.bf16.xpose.msra.mxu0 0
        %620 = vmatprep.subr.bf16.mxu0 0
        %621 = vmatpush1.bf16.xpose.msra.mxu0 %v604
        %622 = vmatprep.subr.bf16.mxu0 0
        %623 = vmatpush2.bf16.xpose.msra.mxu0 0
        %624 = vmatprep.subr.bf16.mxu0 0
        %625 = vmatpush2.bf16.xpose.msra.mxu0 0
        %626 = vmatprep.subr.bf16.mxu0 0
        %627 = vmatpush2.bf16.xpose.msra.mxu0 0
        %628 = vmatprep.subr.bf16.mxu0 0
        %629 = vmatpush2.bf16.xpose.msra.mxu0 0
        %630 = vmatprep.subr.bf16.mxu0 0
        %631 = vmatpush2.bf16.xpose.msra.mxu0 0
        %632 = vmatprep.subr.bf16.mxu0 0
        %633 = vmatpush2.bf16.xpose.msra.mxu0 0
        %634 = vmatprep.subr.bf16.mxu0 0
        %635 = vmatpush2.bf16.xpose.msra.mxu0 0
        %636 = vmatprep.subr.bf16.mxu0 0
        %637 = vmatpush2.bf16.xpose.msra.mxu0 0
        %638 = vmatprep.mubr.bf16.mxu0 0
        %639 = vmatmul.mubr.bf16.gmra.mxu0 %v601
        %v640 = vpop.f32.mrf.mxu0
        %v641 = vadd.f32 0.0, %v640
        %v642 = vpop.f32.mrf.mxu0
        %v643 = vpop.f32.mrf.mxu0
        %v644 = vpop.f32.mrf.mxu0
        %645 = vdwg.mxu0
        %v646 = vmul.f32 %v641, 0.35355338
        %v647 = vadd.f32 %v646, %v481
        %v648 = vsel %vm485, %v647, -inf
        %649 = vmax.xlane.f32.xlu0 %v648
        %v650 = vpop.xlane.xlu0 %649
        %v651 = vsub.f32 %v647, %v650
        %v652 = vmul.f32 %v651, 1.442695
        %v653 = vpow.pop %v652
        %v654 = vsel %vm485, %v653, 0.0
        %655 = vadd.xlane.f32.xlu0 %v654
        %v656 = vpop.xlane.xlu0 %655
        %v657 = vrcp.pop %v656
        %v658 = vmul.f32 %v653, %v657
        %v659 = vpack.c.bf16 %v658, %v658
        %660 = vrot.lane.b32.xlu0 %v475, 56
        %v661 = vpop.permute.xlu0 %660
        %v663 = vsel %vm485, %v659, 0
        %v666 = vsel %vm551, %v661, 0
        %668 = vmatprep.subr.bf16.mxu0 0
        %669 = vmatpush1.bf16.msra.mxu0 0
        %670 = vmatprep.subr.bf16.mxu0 0
        %671 = vmatpush1.bf16.msra.mxu0 0
        %672 = vmatprep.subr.bf16.mxu0 0
        %673 = vmatpush1.bf16.msra.mxu0 0
        %674 = vmatprep.subr.bf16.mxu0 0
        %675 = vmatpush1.bf16.msra.mxu0 0
        %676 = vmatprep.subr.bf16.mxu0 0
        %677 = vmatpush1.bf16.msra.mxu0 0
        %678 = vmatprep.subr.bf16.mxu0 0
        %679 = vmatpush1.bf16.msra.mxu0 0
        %680 = vmatprep.subr.bf16.mxu0 0
        %681 = vmatpush1.bf16.msra.mxu0 0
        %682 = vmatprep.subr.bf16.mxu0 0
        %683 = vmatpush1.bf16.msra.mxu0 %v666
        %684 = vmatprep.subr.bf16.mxu0 0
        %685 = vmatpush2.bf16.msra.mxu0 0
        %686 = vmatprep.subr.bf16.mxu0 0
        %687 = vmatpush2.bf16.msra.mxu0 0
        %688 = vmatprep.subr.bf16.mxu0 0
        %689 = vmatpush2.bf16.msra.mxu0 0
        %690 = vmatprep.subr.bf16.mxu0 0
        %691 = vmatpush2.bf16.msra.mxu0 0
        %692 = vmatprep.subr.bf16.mxu0 0
        %693 = vmatpush2.bf16.msra.mxu0 0
        %694 = vmatprep.subr.bf16.mxu0 0
        %695 = vmatpush2.bf16.msra.mxu0 0
        %696 = vmatprep.subr.bf16.mxu0 0
        %697 = vmatpush2.bf16.msra.mxu0 0
        %698 = vmatprep.subr.bf16.mxu0 0
        %699 = vmatpush2.bf16.msra.mxu0 0
        %700 = vmatprep.mubr.bf16.mxu0 0
        %701 = vmatmul.mubr.bf16.gmra.mxu0 %v663
        %v702 = vpop.f32.mrf.mxu0
        %v703 = vadd.f32 0.0, %v702
        %v704 = vpop.f32.mrf.mxu0
        %v705 = vpop.f32.mrf.mxu0
        %v706 = vpop.f32.mrf.mxu0
        %707 = vdwg.mxu0
        %v708 = vpack.c.bf16 %v703, %v703
        %709 = vrot.lane.b32.xlu0 %v475, 112
        %v710 = vpop.permute.xlu0 %709
        %711 = vrot.lane.b32.xlu0 %v475, 80
        %v712 = vpop.permute.xlu0 %711
        %v714 = vsel %vm485, %v710, 0
        %v717 = vsel %vm485, %v712, 0
        %719 = vmatprep.subr.bf16.mxu0 0
        %720 = vmatpush1.bf16.xpose.msra.mxu0 0
        %721 = vmatprep.subr.bf16.mxu0 0
        %722 = vmatpush1.bf16.xpose.msra.mxu0 0
        %723 = vmatprep.subr.bf16.mxu0 0
        %724 = vmatpush1.bf16.xpose.msra.mxu0 0
        %725 = vmatprep.subr.bf16.mxu0 0
        %726 = vmatpush1.bf16.xpose.msra.mxu0 0
        %727 = vmatprep.subr.bf16.mxu0 0
        %728 = vmatpush1.bf16.xpose.msra.mxu0 0
        %729 = vmatprep.subr.bf16.mxu0 0
        %730 = vmatpush1.bf16.xpose.msra.mxu0 0
        %731 = vmatprep.subr.bf16.mxu0 0
        %732 = vmatpush1.bf16.xpose.msra.mxu0 0
        %733 = vmatprep.subr.bf16.mxu0 0
        %734 = vmatpush1.bf16.xpose.msra.mxu0 %v717
        %735 = vmatprep.subr.bf16.mxu0 0
        %736 = vmatpush2.bf16.xpose.msra.mxu0 0
        %737 = vmatprep.subr.bf16.mxu0 0
        %738 = vmatpush2.bf16.xpose.msra.mxu0 0
        %739 = vmatprep.subr.bf16.mxu0 0
        %740 = vmatpush2.bf16.xpose.msra.mxu0 0
        %741 = vmatprep.subr.bf16.mxu0 0
        %742 = vmatpush2.bf16.xpose.msra.mxu0 0
        %743 = vmatprep.subr.bf16.mxu0 0
        %744 = vmatpush2.bf16.xpose.msra.mxu0 0
        %745 = vmatprep.subr.bf16.mxu0 0
        %746 = vmatpush2.bf16.xpose.msra.mxu0 0
        %747 = vmatprep.subr.bf16.mxu0 0
        %748 = vmatpush2.bf16.xpose.msra.mxu0 0
        %749 = vmatprep.subr.bf16.mxu0 0
        %750 = vmatpush2.bf16.xpose.msra.mxu0 0
        %751 = vmatprep.mubr.bf16.mxu0 0
        %752 = vmatmul.mubr.bf16.gmra.mxu0 %v714
        %v753 = vpop.f32.mrf.mxu0
        %v754 = vadd.f32 0.0, %v753
        %v755 = vpop.f32.mrf.mxu0
        %v756 = vpop.f32.mrf.mxu0
        %v757 = vpop.f32.mrf.mxu0
        %758 = vdwg.mxu0
        %v759 = vmul.f32 %v754, 0.35355338
        %v760 = vadd.f32 %v759, %v481
        %v761 = vsel %vm485, %v760, -inf
        %762 = vmax.xlane.f32.xlu0 %v761
        %v763 = vpop.xlane.xlu0 %762
        %v764 = vsub.f32 %v760, %v763
        %v765 = vmul.f32 %v764, 1.442695
        %v766 = vpow.pop %v765
        %v767 = vsel %vm485, %v766, 0.0
        %768 = vadd.xlane.f32.xlu0 %v767
        %v769 = vpop.xlane.xlu0 %768
        %v770 = vrcp.pop %v769
        %v771 = vmul.f32 %v766, %v770
        %v772 = vpack.c.bf16 %v771, %v771
        %773 = vrot.lane.b32.xlu0 %v475, 48
        %v774 = vpop.permute.xlu0 %773
        %v776 = vsel %vm485, %v772, 0
        %v779 = vsel %vm551, %v774, 0
        %781 = vmatprep.subr.bf16.mxu0 0
        %782 = vmatpush1.bf16.msra.mxu0 0
        %783 = vmatprep.subr.bf16.mxu0 0
        %784 = vmatpush1.bf16.msra.mxu0 0
        %785 = vmatprep.subr.bf16.mxu0 0
        %786 = vmatpush1.bf16.msra.mxu0 0
        %787 = vmatprep.subr.bf16.mxu0 0
        %788 = vmatpush1.bf16.msra.mxu0 0
        %789 = vmatprep.subr.bf16.mxu0 0
        %790 = vmatpush1.bf16.msra.mxu0 0
        %791 = vmatprep.subr.bf16.mxu0 0
        %792 = vmatpush1.bf16.msra.mxu0 0
        %793 = vmatprep.subr.bf16.mxu0 0
        %794 = vmatpush1.bf16.msra.mxu0 0
        %795 = vmatprep.subr.bf16.mxu0 0
        %796 = vmatpush1.bf16.msra.mxu0 %v779
        %797 = vmatprep.subr.bf16.mxu0 0
        %798 = vmatpush2.bf16.msra.mxu0 0
        %799 = vmatprep.subr.bf16.mxu0 0
        %800 = vmatpush2.bf16.msra.mxu0 0
        %801 = vmatprep.subr.bf16.mxu0 0
        %802 = vmatpush2.bf16.msra.mxu0 0
        %803 = vmatprep.subr.bf16.mxu0 0
        %804 = vmatpush2.bf16.msra.mxu0 0
        %805 = vmatprep.subr.bf16.mxu0 0
        %806 = vmatpush2.bf16.msra.mxu0 0
        %807 = vmatprep.subr.bf16.mxu0 0
        %808 = vmatpush2.bf16.msra.mxu0 0
        %809 = vmatprep.subr.bf16.mxu0 0
        %810 = vmatpush2.bf16.msra.mxu0 0
        %811 = vmatprep.subr.bf16.mxu0 0
        %812 = vmatpush2.bf16.msra.mxu0 0
        %813 = vmatprep.mubr.bf16.mxu0 0
        %814 = vmatmul.mubr.bf16.gmra.mxu0 %v776
        %v815 = vpop.f32.mrf.mxu0
        %v816 = vadd.f32 0.0, %v815
        %v817 = vpop.f32.mrf.mxu0
        %v818 = vpop.f32.mrf.mxu0
        %v819 = vpop.f32.mrf.mxu0
        %820 = vdwg.mxu0
        %v821 = vpack.c.bf16 %v816, %v816
        %822 = vrot.lane.b32.xlu0 %v475, 104
        %v823 = vpop.permute.xlu0 %822
        %824 = vrot.lane.b32.xlu0 %v475, 72
        %v825 = vpop.permute.xlu0 %824
        %v827 = vsel %vm485, %v823, 0
        %v830 = vsel %vm485, %v825, 0
        %832 = vmatprep.subr.bf16.mxu0 0
        %833 = vmatpush1.bf16.xpose.msra.mxu0 0
        %834 = vmatprep.subr.bf16.mxu0 0
        %835 = vmatpush1.bf16.xpose.msra.mxu0 0
        %836 = vmatprep.subr.bf16.mxu0 0
        %837 = vmatpush1.bf16.xpose.msra.mxu0 0
        %838 = vmatprep.subr.bf16.mxu0 0
        %839 = vmatpush1.bf16.xpose.msra.mxu0 0
        %840 = vmatprep.subr.bf16.mxu0 0
        %841 = vmatpush1.bf16.xpose.msra.mxu0 0
        %842 = vmatprep.subr.bf16.mxu0 0
        %843 = vmatpush1.bf16.xpose.msra.mxu0 0
        %844 = vmatprep.subr.bf16.mxu0 0
        %845 = vmatpush1.bf16.xpose.msra.mxu0 0
        %846 = vmatprep.subr.bf16.mxu0 0
        %847 = vmatpush1.bf16.xpose.msra.mxu0 %v830
        %848 = vmatprep.subr.bf16.mxu0 0
        %849 = vmatpush2.bf16.xpose.msra.mxu0 0
        %850 = vmatprep.subr.bf16.mxu0 0
        %851 = vmatpush2.bf16.xpose.msra.mxu0 0
        %852 = vmatprep.subr.bf16.mxu0 0
        %853 = vmatpush2.bf16.xpose.msra.mxu0 0
        %854 = vmatprep.subr.bf16.mxu0 0
        %855 = vmatpush2.bf16.xpose.msra.mxu0 0
        %856 = vmatprep.subr.bf16.mxu0 0
        %857 = vmatpush2.bf16.xpose.msra.mxu0 0
        %858 = vmatprep.subr.bf16.mxu0 0
        %859 = vmatpush2.bf16.xpose.msra.mxu0 0
        %860 = vmatprep.subr.bf16.mxu0 0
        %861 = vmatpush2.bf16.xpose.msra.mxu0 0
        %862 = vmatprep.subr.bf16.mxu0 0
        %863 = vmatpush2.bf16.xpose.msra.mxu0 0
        %864 = vmatprep.mubr.bf16.mxu0 0
        %865 = vmatmul.mubr.bf16.gmra.mxu0 %v827
        %v866 = vpop.f32.mrf.mxu0
        %v867 = vadd.f32 0.0, %v866
        %v868 = vpop.f32.mrf.mxu0
        %v869 = vpop.f32.mrf.mxu0
        %v870 = vpop.f32.mrf.mxu0
        %871 = vdwg.mxu0
        %v872 = vmul.f32 %v867, 0.35355338
        %v873 = vadd.f32 %v872, %v481
        %v874 = vsel %vm485, %v873, -inf
        %875 = vmax.xlane.f32.xlu0 %v874
        %v876 = vpop.xlane.xlu0 %875
        %v877 = vsub.f32 %v873, %v876
        %v878 = vmul.f32 %v877, 1.442695
        %v879 = vpow.pop %v878
        %v880 = vsel %vm485, %v879, 0.0
        %881 = vadd.xlane.f32.xlu0 %v880
        %v882 = vpop.xlane.xlu0 %881
        %v883 = vrcp.pop %v882
        %v884 = vmul.f32 %v879, %v883
        %v885 = vpack.c.bf16 %v884, %v884
        %886 = vrot.lane.b32.xlu0 %v475, 40
        %v887 = vpop.permute.xlu0 %886
        %v889 = vsel %vm485, %v885, 0
        %v892 = vsel %vm551, %v887, 0
        %894 = vmatprep.subr.bf16.mxu0 0
        %895 = vmatpush1.bf16.msra.mxu0 0
        %896 = vmatprep.subr.bf16.mxu0 0
        %897 = vmatpush1.bf16.msra.mxu0 0
        %898 = vmatprep.subr.bf16.mxu0 0
        %899 = vmatpush1.bf16.msra.mxu0 0
        %900 = vmatprep.subr.bf16.mxu0 0
        %901 = vmatpush1.bf16.msra.mxu0 0
        %902 = vmatprep.subr.bf16.mxu0 0
        %903 = vmatpush1.bf16.msra.mxu0 0
        %904 = vmatprep.subr.bf16.mxu0 0
        %905 = vmatpush1.bf16.msra.mxu0 0
        %906 = vmatprep.subr.bf16.mxu0 0
        %907 = vmatpush1.bf16.msra.mxu0 0
        %908 = vmatprep.subr.bf16.mxu0 0
        %909 = vmatpush1.bf16.msra.mxu0 %v892
        %910 = vmatprep.subr.bf16.mxu0 0
        %911 = vmatpush2.bf16.msra.mxu0 0
        %912 = vmatprep.subr.bf16.mxu0 0
        %913 = vmatpush2.bf16.msra.mxu0 0
        %914 = vmatprep.subr.bf16.mxu0 0
        %915 = vmatpush2.bf16.msra.mxu0 0
        %916 = vmatprep.subr.bf16.mxu0 0
        %917 = vmatpush2.bf16.msra.mxu0 0
        %918 = vmatprep.subr.bf16.mxu0 0
        %919 = vmatpush2.bf16.msra.mxu0 0
        %920 = vmatprep.subr.bf16.mxu0 0
        %921 = vmatpush2.bf16.msra.mxu0 0
        %922 = vmatprep.subr.bf16.mxu0 0
        %923 = vmatpush2.bf16.msra.mxu0 0
        %924 = vmatprep.subr.bf16.mxu0 0
        %925 = vmatpush2.bf16.msra.mxu0 0
        %926 = vmatprep.mubr.bf16.mxu0 0
        %927 = vmatmul.mubr.bf16.gmra.mxu0 %v889
        %v928 = vpop.f32.mrf.mxu0
        %v929 = vadd.f32 0.0, %v928
        %v930 = vpop.f32.mrf.mxu0
        %v931 = vpop.f32.mrf.mxu0
        %v932 = vpop.f32.mrf.mxu0
        %933 = vdwg.mxu0
        %v934 = vpack.c.bf16 %v929, %v929
        %936 = vrot.lane.b32.xlu0 %v708, 8
        %v937 = vpop.permute.xlu0 %936
        %939 = vrot.lane.b32.xlu0 %v821, 16
        %v940 = vpop.permute.xlu0 %939
        %942 = vrot.lane.b32.xlu0 %v934, 24
        %v943 = vpop.permute.xlu0 %942
        %v946 = vsel %vm485, %v595, %v937
        %vm947 = vcmask 130048
        %v949 = vsel %vm947, %v946, %v940
        %vm950 = vcmask 195584
        %v952 = vsel %vm950, %v949, %v943
        %v953 = vld [vmem:[%s4] sm:$0xf]
        %v954 = vld [vmem:[%s4 + $0x4] sm:$0xf]
        %v955 = vld [vmem:[%s4 + $0x8] sm:$0xf]
        %v956 = vld [vmem:[%s4 + $0xc] sm:$0xf]
        %v961 = vunpack.c.l.b16 %v953
        %v962 = vunpack.c.l.b16 %v954
        %v963 = vunpack.c.l.b16 %v955
        %v964 = vunpack.c.l.b16 %v956
        %v965 = vpack.c.b16 %v962, %v961
        %v966 = vpack.c.b16 %v964, %v963
        %v969 = vsel %vm386, %v952, 0
        %971 = vmatprep.subr.bf16.mxu0 0
        %972 = vmatpush1.bf16.msra.mxu0 0
        %973 = vmatprep.subr.bf16.mxu0 0
        %974 = vmatpush1.bf16.msra.mxu0 0
        %975 = vmatprep.subr.bf16.mxu0 0
        %976 = vmatpush1.bf16.msra.mxu0 0
        %977 = vmatprep.subr.bf16.mxu0 0
        %978 = vmatpush1.bf16.msra.mxu0 0
        %979 = vmatprep.subr.bf16.mxu0 0
        %980 = vmatpush1.bf16.msra.mxu0 0
        %981 = vmatprep.subr.bf16.mxu0 0
        %982 = vmatpush1.bf16.msra.mxu0 0
        %983 = vmatprep.subr.bf16.mxu0 0
        %984 = vmatpush1.bf16.msra.mxu0 %v966
        %985 = vmatprep.subr.bf16.mxu0 0
        %986 = vmatpush1.bf16.msra.mxu0 %v965
        %987 = vmatprep.subr.bf16.mxu0 0
        %988 = vmatpush2.bf16.msra.mxu0 0
        %989 = vmatprep.subr.bf16.mxu0 0
        %990 = vmatpush2.bf16.msra.mxu0 0
        %991 = vmatprep.subr.bf16.mxu0 0
        %992 = vmatpush2.bf16.msra.mxu0 0
        %993 = vmatprep.subr.bf16.mxu0 0
        %994 = vmatpush2.bf16.msra.mxu0 0
        %995 = vmatprep.subr.bf16.mxu0 0
        %996 = vmatpush2.bf16.msra.mxu0 0
        %997 = vmatprep.subr.bf16.mxu0 0
        %998 = vmatpush2.bf16.msra.mxu0 0
        %999 = vmatprep.subr.bf16.mxu0 0
        %1000 = vmatpush2.bf16.msra.mxu0 0
        %1001 = vmatprep.subr.bf16.mxu0 0
        %1002 = vmatpush2.bf16.msra.mxu0 0
        %1003 = vmatprep.mubr.bf16.mxu0 0
        %1004 = vmatmul.mubr.bf16.gmra.mxu0 %v969
        %v1005 = vpop.f32.mrf.mxu0
        %v1006 = vadd.f32 0.0, %v1005
        %v1007 = vpop.f32.mrf.mxu0
        %v1008 = vpop.f32.mrf.mxu0
        %v1009 = vpop.f32.mrf.mxu0
        %1010 = vdwg.mxu0
        %v1011 = vadd.f32 %v383, %v1006
        %v1012 = vld [vmem:[%s5] sm:$0x1]
        %v1013 = vld [vmem:[%s6] sm:$0x1]
        %v1014 = vsel %vm386, %v1011, 0.0
        %1015 = vadd.xlane.f32.xlu0 %v1014
        %v1016 = vpop.xlane.xlu0 %1015
        %v1017 = vmul.f32 %v1016, %v390
        %v1018 = vsub.f32 %v1011, %v1017
        %v1019 = vmul.f32 %v1018, %v1018
        %v1020 = vsel %vm386, %v1019, 0.0
        %1021 = vadd.xlane.f32.xlu0 %v1020
        %v1022 = vpop.xlane.xlu0 %1021
        %v1023 = vmul.f32 %v1022, %v390
        %v1024 = vadd.f32 %v1023, 1e-05
        %v1025 = vrsqrt.pop %v1024
        %v1026 = vmul.f32 %v1018, %v1025
        %v1028 = vlaneseq
        %v1029 = vshrl.u32 %v1028, 7
        %v1030 = vsub.s32 0, %v1029
        %v1031 = vrot.slane %v1012, %v1030
        %v1033 = vmul.f32 %v1026, %v1031
        %v1035 = vlaneseq
        %v1036 = vshrl.u32 %v1035, 7
        %v1037 = vsub.s32 0, %v1036
        %v1038 = vrot.slane %v1013, %v1037
        %v1040 = vadd.f32 %v1033, %v1038
        %v1041 = vpack.c.bf16 %v1040, %v1040
        %v1042 = vld [vmem:[%s7] sm:$0xf]
        %v1043 = vld [vmem:[%s7 + $0x4] sm:$0xf]
        %v1044 = vld [vmem:[%s7 + $0x8] sm:$0xf]
        %v1045 = vld [vmem:[%s7 + $0xc] sm:$0xf]
        %v1046 = vld [vmem:[%s8] sm:$0x1]
        %v1048 = vlaneseq
        %v1049 = vshrl.u32 %v1048, 7
        %v1050 = vsub.s32 0, %v1049
        %v1051 = vrot.slane %v1046, %v1050
        %v1057 = vunpack.c.l.b16 %v1042
        %v1058 = vunpack.c.l.b16 %v1043
        %v1059 = vunpack.c.l.b16 %v1044
        %v1060 = vunpack.c.l.b16 %v1045
        %v1061 = vpack.c.b16 %v1058, %v1057
        %v1062 = vpack.c.b16 %v1060, %v1059
        %v1066 = vsel %vm386, %v1041, 0
        %1068 = vmatprep.subr.bf16.mxu0 0
        %1069 = vmatpush1.bf16.msra.mxu0 0
        %1070 = vmatprep.subr.bf16.mxu0 0
        %1071 = vmatpush1.bf16.msra.mxu0 0
        %1072 = vmatprep.subr.bf16.mxu0 0
        %1073 = vmatpush1.bf16.msra.mxu0 0
        %1074 = vmatprep.subr.bf16.mxu0 0
        %1075 = vmatpush1.bf16.msra.mxu0 0
        %1076 = vmatprep.subr.bf16.mxu0 0
        %1077 = vmatpush1.bf16.msra.mxu0 0
        %1078 = vmatprep.subr.bf16.mxu0 0
        %1079 = vmatpush1.bf16.msra.mxu0 0
        %1080 = vmatprep.subr.bf16.mxu0 0
        %1081 = vmatpush1.bf16.msra.mxu0 %v1062
        %1082 = vmatprep.subr.bf16.mxu0 0
        %1083 = vmatpush1.bf16.msra.mxu0 %v1061
        %1084 = vmatprep.subr.bf16.mxu0 0
        %1085 = vmatpush2.bf16.msra.mxu0 0
        %1086 = vmatprep.subr.bf16.mxu0 0
        %1087 = vmatpush2.bf16.msra.mxu0 0
        %1088 = vmatprep.subr.bf16.mxu0 0
        %1089 = vmatpush2.bf16.msra.mxu0 0
        %1090 = vmatprep.subr.bf16.mxu0 0
        %1091 = vmatpush2.bf16.msra.mxu0 0
        %1092 = vmatprep.subr.bf16.mxu0 0
        %1093 = vmatpush2.bf16.msra.mxu0 0
        %1094 = vmatprep.subr.bf16.mxu0 0
        %1095 = vmatpush2.bf16.msra.mxu0 0
        %1096 = vmatprep.subr.bf16.mxu0 0
        %1097 = vmatpush2.bf16.msra.mxu0 0
        %1098 = vmatprep.subr.bf16.mxu0 0
        %1099 = vmatpush2.bf16.msra.mxu0 0
        %1100 = vmatprep.mubr.bf16.mxu0 0
        %1101 = vmatmul.mubr.bf16.gmra.mxu0 %v1066
        %v1102 = vpop.f32.mrf.mxu0
        %v1103 = vadd.f32 %v1051, %v1102
        %v1104 = vpop.f32.mrf.mxu0
        %v1105 = vpop.f32.mrf.mxu0
        %v1106 = vpop.f32.mrf.mxu0
        %1107 = vdwg.mxu0
        %v1108 = vmul.f32 %v1103, 0.5
        %v1109 = vmul.f32 %v1103, 0.70710677
        %vm1110 = vcmp.ge.f32.partialorder %v1109, 0.0
        %v1111 = vsel %vm1110, 1.0, -1.0
        %v1112 = vand.u32 2147483647, %v1109
        %v1113 = vmul.f32 %v1112, 0.3275911
        %v1114 = vadd.f32 %v1113, 1.0
        %v1115 = vrcp.pop %v1114
        %v1116 = vmul.f32 1.0, %v1115
        %v1117 = vmul.f32 %v1116, 1.0614054
        %v1118 = vadd.f32 %v1117, -1.4531521
        %v1119 = vmul.f32 %v1118, %v1116
        %v1120 = vadd.f32 %v1119, 1.4214138
        %v1121 = vmul.f32 %v1120, %v1116
        %v1122 = vadd.f32 %v1121, -0.28449672
        %v1123 = vmul.f32 %v1122, %v1116
        %v1124 = vadd.f32 %v1123, 0.2548296
        %v1125 = vmul.f32 %v1124, %v1116
        %v1126 = vsub.f32 0.0, %v1112
        %v1127 = vmul.f32 %v1126, %v1112
        %v1128 = vmul.f32 %v1127, 1.442695
        %v1129 = vpow.pop %v1128
        %v1130 = vmul.f32 %v1125, %v1129
        %v1131 = vsub.f32 1.0, %v1130
        %v1132 = vmul.f32 %v1111, %v1131
        %v1133 = vadd.f32 %v1132, 1.0
        %v1134 = vmul.f32 %v1108, %v1133
        %v1135 = vpack.c.bf16 %v1134, %v1134
        %v1136 = vld [vmem:[%s9] sm:$0xf]
        %v1137 = vld [vmem:[%s9 + $0x4] sm:$0xf]
        %v1138 = vld [vmem:[%s9 + $0x8] sm:$0xf]
        %v1139 = vld [vmem:[%s9 + $0xc] sm:$0xf]
        %v1140 = vld [vmem:[%s9 + $0x10] sm:$0xf]
        %v1141 = vld [vmem:[%s9 + $0x14] sm:$0xf]
        %v1142 = vld [vmem:[%s9 + $0x18] sm:$0xf]
        %v1143 = vld [vmem:[%s9 + $0x1c] sm:$0xf]
        %v1144 = vld [vmem:[%s9 + $0x20] sm:$0xf]
        %v1145 = vld [vmem:[%s9 + $0x24] sm:$0xf]
        %v1146 = vld [vmem:[%s9 + $0x28] sm:$0xf]
        %v1147 = vld [vmem:[%s9 + $0x2c] sm:$0xf]
        %v1148 = vld [vmem:[%s9 + $0x30] sm:$0xf]
        %v1149 = vld [vmem:[%s9 + $0x34] sm:$0xf]
        %v1150 = vld [vmem:[%s9 + $0x38] sm:$0xf]
        %v1151 = vld [vmem:[%s9 + $0x3c] sm:$0xf]
        %v1152 = vld [vmem:[%s10] sm:$0x1]
        %v1154 = vlaneseq
        %v1155 = vshrl.u32 %v1154, 7
        %v1156 = vsub.s32 0, %v1155
        %v1157 = vrot.slane %v1152, %v1156
        %v1175 = vunpack.c.l.b16 %v1136
        %v1176 = vunpack.c.l.b16 %v1137
        %v1177 = vunpack.c.l.b16 %v1138
        %v1178 = vunpack.c.l.b16 %v1139
        %v1179 = vunpack.c.l.b16 %v1140
        %v1180 = vunpack.c.l.b16 %v1141
        %v1181 = vunpack.c.l.b16 %v1142
        %v1182 = vunpack.c.l.b16 %v1143
        %v1183 = vunpack.c.l.b16 %v1144
        %v1184 = vunpack.c.l.b16 %v1145
        %v1185 = vunpack.c.l.b16 %v1146
        %v1186 = vunpack.c.l.b16 %v1147
        %v1187 = vunpack.c.l.b16 %v1148
        %v1188 = vunpack.c.l.b16 %v1149
        %v1189 = vunpack.c.l.b16 %v1150
        %v1190 = vunpack.c.l.b16 %v1151
        %v1191 = vpack.c.b16 %v1176, %v1175
        %v1192 = vpack.c.b16 %v1178, %v1177
        %v1193 = vpack.c.b16 %v1180, %v1179
        %v1194 = vpack.c.b16 %v1182, %v1181
        %v1195 = vpack.c.b16 %v1184, %v1183
        %v1196 = vpack.c.b16 %v1186, %v1185
        %v1197 = vpack.c.b16 %v1188, %v1187
        %v1198 = vpack.c.b16 %v1190, %v1189
        %1207 = vmatprep.subr.bf16.mxu0 0
        %1208 = vmatpush1.bf16.msra.mxu0 %v1198
        %1209 = vmatprep.subr.bf16.mxu0 0
        %1210 = vmatpush1.bf16.msra.mxu0 %v1197
        %1211 = vmatprep.subr.bf16.mxu0 0
        %1212 = vmatpush1.bf16.msra.mxu0 %v1196
        %1213 = vmatprep.subr.bf16.mxu0 0
        %1214 = vmatpush1.bf16.msra.mxu0 %v1195
        %1215 = vmatprep.subr.bf16.mxu0 0
        %1216 = vmatpush1.bf16.msra.mxu0 %v1194
        %1217 = vmatprep.subr.bf16.mxu0 0
        %1218 = vmatpush1.bf16.msra.mxu0 %v1193
        %1219 = vmatprep.subr.bf16.mxu0 0
        %1220 = vmatpush1.bf16.msra.mxu0 %v1192
        %1221 = vmatprep.subr.bf16.mxu0 0
        %1222 = vmatpush1.bf16.msra.mxu0 %v1191
        %1223 = vmatprep.subr.bf16.mxu0 0
        %1224 = vmatpush2.bf16.msra.mxu0 0
        %1225 = vmatprep.subr.bf16.mxu0 0
        %1226 = vmatpush2.bf16.msra.mxu0 0
        %1227 = vmatprep.subr.bf16.mxu0 0
        %1228 = vmatpush2.bf16.msra.mxu0 0
        %1229 = vmatprep.subr.bf16.mxu0 0
        %1230 = vmatpush2.bf16.msra.mxu0 0
        %1231 = vmatprep.subr.bf16.mxu0 0
        %1232 = vmatpush2.bf16.msra.mxu0 0
        %1233 = vmatprep.subr.bf16.mxu0 0
        %1234 = vmatpush2.bf16.msra.mxu0 0
        %1235 = vmatprep.subr.bf16.mxu0 0
        %1236 = vmatpush2.bf16.msra.mxu0 0
        %1237 = vmatprep.subr.bf16.mxu0 0
        %1238 = vmatpush2.bf16.msra.mxu0 0
        %1239 = vmatprep.mubr.bf16.mxu0 0
        %1240 = vmatmul.mubr.bf16.gmra.mxu0 %v1135
        %v1241 = vpop.f32.mrf.mxu0
        %v1242 = vadd.f32 %v1157, %v1241
        %v1243 = vpop.f32.mrf.mxu0
        %v1244 = vpop.f32.mrf.mxu0
        %v1245 = vpop.f32.mrf.mxu0
        %1246 = vdwg.mxu0
        %v1247 = vadd.f32 %v1011, %v1242
        %1248 = vst.msk [vmem:[%s377] sm:$0xff] %vm386, %v1247
        %s1249 = sand.u32 %s269, 1
        %s1250 = scalar_lea.sflag [#allocation3], %s1249
        %s1251 = sand.u32 %s269, 1
        %s1252 = smul.addr %s1251, 8
        %s1253 = scalar_lea.vmem [#allocation2], %s1252
        // Predicated region
        $region65: #{tpu_custom_call.1} parent=63 // pred_check
          %p1254 = pneg %p279
        $region66: #{tpu_custom_call.1} parent=63 // pred_check_branch
          %1256 = sbr.rel (%p1254) target = $region68
        $region67: #{tpu_custom_call.1} parent=63 // pred_region
          %s1258 = ssub.s32 128, 128
          %1259 = vsyncadd %s1250, %s1258
          %s1260 = smul.addr %s25, 128
          %s1261 = scalar_lea.hbm %s11, %s1260
          %s1263 = sshll.u32 %s1253, 4
          %s1264 = int_to_ptr.vmem [resolvable:$true] %s1263
          %1266 = dma.vmem_to_hbm [thread:$0]  %s1264, 128, %s1261, %s1250
        $region68: #{tpu_custom_call.1} parent=63 // pred_fallthru
          _
      $region64: #{tpu_custom_call.1} parent=5 // pred_fallthru
        _
      %p1267 = scmp.le.s32.totalorder 2, %s20
      // Predicated region
      $region69: #{tpu_custom_call.1} parent=5 // pred_check
        %p1268 = pneg %p1267
      $region70: #{tpu_custom_call.1} parent=5 // pred_check_branch
        %1270 = sbr.rel (%p1268) target = $region72
      $region71: #{tpu_custom_call.1} parent=5 // pred_region
        %s1271 = ssub.s32 %s20, 2
        // Predicated region
        $region73: #{tpu_custom_call.1} parent=71 // pred_check
          %p1272 = pneg %p285
        $region74: #{tpu_custom_call.1} parent=71 // pred_check_branch
          %1274 = sbr.rel (%p1272) target = $region76
        $region75: #{tpu_custom_call.1} parent=71 // pred_region
          %s1275 = sand.u32 %s270, 1
          %s1276 = scalar_lea.sflag [#allocation3], %s1275
          %s1277 = sand.u32 %s270, 1
          %s1278 = smul.addr %s1277, 8
          %s1279 = scalar_lea.vmem [#allocation2], %s1278
          %1280 = dma.done %s1276, 128
        $region76: #{tpu_custom_call.1} parent=71 // pred_fallthru
          _
      $region72: #{tpu_custom_call.1} parent=5 // pred_fallthru
        _
    $region6: #{tpu_custom_call.1} parent=1 // loop_footer
      %s24 = sadd.s32 1, %s20
    $region7: #{tpu_custom_call.1} parent=1 // loop_footer_branch
      %19 = sbr.rel target = $region3
    $region8: #{tpu_custom_call.1} parent=1 // loop_exit
      _
    %1281 = vsyncpa [#allocation3], 1
    %s1282 = scalar_lea.sflag [#allocation3], 1
    %1283 = vsyncpa %s1282, 1

</llo_original>
